<compile_context>
chip_gen: v6e
topology: v6e:2x2x1
jax: 0.10.0
libtpu: 0.0.40
codegen_flags: <defaults>
</compile_context>

<pallas_src>
import jax
import jax.numpy as jnp
from jax.experimental import pallas as pl
from jax.experimental.pallas import tpu as pltpu


def cross_attention_kernel(
    x_ref, cond_ref,
    wq_ref, bq_ref,
    wkv_ref, bkv_ref,
    wo_ref, bo_ref,
    o_ref,
    kT_scratch, v_scratch,
):
    # x_ref:    (1, Cq, tq)  input dtype     cond_ref: (1, Cc, Lc) input dtype
    # wq: (E, Cq) bf16 (pre-scaled by 1/sqrt(E))      bq: (E, 1) f32 (pre-scaled)
    # wkv: (2E, Cc) bf16 (cond_proj fused, K stacked over V)  bkv: (2E, 1) f32
    # wo: (Cq, E) bf16                                 bo: (Cq, 1) f32
    # kT_scratch: (Lc, E) bf16   v_scratch: (E, Lc) bf16  (persist per batch/half)
    qi = pl.program_id(2)
    E = wq_ref.shape[0]

    @pl.when(qi == 0)
    def _compute_kv():
        # One stacked MXU pass: [K; V] = Wkv @ cond + bkv.
        c = cond_ref[0].astype(jnp.bfloat16)                            # (Cc, Lc)
        kv = jnp.dot(wkv_ref[...], c,
                     preferred_element_type=jnp.float32) + bkv_ref[...]  # (2E, Lc)
        # Cache K transposed so the per-tile score matmul is a plain
        # (Lc, E) @ (E, tq) dot (no per-tile transposes).
        kT_scratch[...] = kv[:E].T.astype(jnp.bfloat16)                 # (Lc, E)
        v_scratch[...] = kv[E:].astype(jnp.bfloat16)                    # (E, Lc)

    x = x_ref[0]                                                        # (Cq, tq)
    x_bf = x.astype(jnp.bfloat16)

    # Q = (Wq/sqrt(E)) @ x + bq/sqrt(E)   (scale folded at wrapper time).
    q = (jnp.dot(wq_ref[...], x_bf, preferred_element_type=jnp.float32)
         + bq_ref[...]).astype(jnp.bfloat16)                            # (E, tq)

    # scores^T: (Lc, tq); softmax over the Lc (sublane) axis.
    # TODO(synk): for very long cond sequences, stage cond via pl.ANY + manual
    # DMA under qi==0 (or an Lc-tiled online softmax) to bound VMEM on v7x.
    s = jnp.dot(kT_scratch[...], q, preferred_element_type=jnp.float32)
    s = s - jnp.max(s, axis=0, keepdims=True)
    p = jnp.exp(s)
    denom = jnp.sum(p, axis=0, keepdims=True)                           # (1, tq)

    # Un-normalized O = V @ P, then normalize the (E, tq) result (cheaper than
    # scaling the (Lc, tq) probabilities whenever Lc > E).
    o = jnp.dot(v_scratch[...], p.astype(jnp.bfloat16),
                preferred_element_type=jnp.float32)                     # (E, tq)
    o = o * pl.reciprocal(denom, approx=True)

    # out = Wo @ O + bo + x  (residual add in the input's full precision).
    out = (jnp.dot(wo_ref[...], o.astype(jnp.bfloat16),
                   preferred_element_type=jnp.float32)
           + bo_ref[...]
           + x.astype(jnp.float32))                                     # (Cq, tq)
    o_ref[0] = out.astype(o_ref.dtype)


def _round_up(x, m):
    return ((x + m - 1) // m) * m


def _pick_q_tile(lq_pad):
    # Prefer 512/256 (keeps the 2x256x256 MXUs of v6e/v7x full); 128 floor.
    for t in (512, 256, 128):
        if lq_pad % t == 0:
            return t
    return 128  # unreachable: lq_pad is a multiple of 128


def _vmem_limit_bytes(need_bytes):
    # Generation-aware cap: <= 75% of physical VMEM (48 MiB on v7x per-TC,
    # up to 96 MiB on v5e/v6e) so the compiler keeps internal-scratch headroom.
    try:
        phys = int(pltpu.get_tpu_info().vmem_capacity_bytes)
    except Exception:
        phys = 64 * 1024 * 1024  # conservative (v7x per-TC size)
    cap = (phys * 3) // 4
    return int(max(32 * 1024 * 1024, min(int(need_bytes), cap)))


def cross_attention_pallas(x_ncw, cond_ncw, params, out_dtype=None):
    """x_ncw: (B, Cq, Lq), cond_ncw: (B, Cc, Lc)  -- PyTorch NCW layout.

    out_dtype: pass jnp.bfloat16 (if downstream allows) to halve the output
    writeback traffic -- matters most on v5e's HBM bandwidth.
    """
    B, Cq, Lq = x_ncw.shape
    Bc, Cc, Lc = cond_ncw.shape
    assert Bc == B
    E = params["wq"].shape[0]
    out_dtype = out_dtype or x_ncw.dtype

    f32, bf16 = jnp.float32, jnp.bfloat16

    # ---- wrapper-time (static) weight prep --------------------------------
    scale = 1.0 / (float(E) ** 0.5)
    # Fold the softmax 1/sqrt(E) into the query projection.
    wq = (params["wq"].astype(f32) * scale).astype(bf16)                 # (E, Cq)
    bq = (params["bq"].astype(f32) * scale).reshape(E, 1)                # (E, 1) f32
    # Fuse cond_proj into key/value:  Wk(Wc c + bc) + bk = Wk' c + bk',
    # and stack K over V so the per-batch KV stage is a single MXU pass.
    wk_f = params["wk"] @ params["wc"]
    bk_f = params["wk"] @ params["bc"] + params["bk"]
    wv_f = params["wv"] @ params["wc"]
    bv_f = params["wv"] @ params["bc"] + params["bv"]
    wkv = jnp.concatenate([wk_f, wv_f], axis=0).astype(bf16)             # (2E, Cc)
    bkv = jnp.concatenate([bk_f, bv_f], axis=0).reshape(2 * E, 1).astype(f32)
    wo = params["wo"].astype(bf16)                                       # (Cq, E)
    bo = params["bo"].reshape(Cq, 1).astype(f32)

    # ---- spatial padding: keep output stores lane-dense (multiple of 128) --
    Lq_pad = _round_up(Lq, 128)
    x_p = x_ncw if Lq_pad == Lq else jnp.pad(
        x_ncw, ((0, 0), (0, 0), (0, Lq_pad - Lq)))

    tq = _pick_q_tile(Lq_pad)
    nq = Lq_pad // tq
    # v7x has 2 TensorCores: if the batch axis alone can't keep both busy
    # (B odd / 1), split the q-tile axis into two core-safe halves; each half
    # recomputes K/V into its own scratch under qi == 0.
    q_split = 2 if (B % 2 == 1 and nq % 2 == 0) else 1
    nq_per = nq // q_split

    # ---- explicit VMEM budget ((8,128)-padded, real buffer counts) --------
    def tile_bytes(sub, lane, itemsize):
        return _round_up(sub, 8) * _round_up(lane, 128) * itemsize

    x_it = jnp.dtype(x_ncw.dtype).itemsize
    c_it = jnp.dtype(cond_ncw.dtype).itemsize
    o_it = jnp.dtype(out_dtype).itemsize
    need = (
        2 * tile_bytes(Cq, tq, x_it)              # x block (double-buffered)
        + 2 * tile_bytes(Cq, tq, o_it)            # out block (double-buffered)
        + 2 * tile_bytes(Cc, Lc, c_it)            # cond block (double-buffered)
        + tile_bytes(E, Cq, 2) + tile_bytes(2 * E, Cc, 2)
        + tile_bytes(Cq, E, 2)                    # weights (single-buffered)
        + 4 * 128 * (_round_up(E, 8) + _round_up(2 * E, 8) + _round_up(Cq, 8))
        + tile_bytes(Lc, E, 2) + tile_bytes(E, Lc, 2)   # K^T / V scratch
        + 2 * tile_bytes(2 * E, Lc, 4)            # f32 KV temporaries (qi == 0)
    )
    vmem_limit = _vmem_limit_bytes(need * 2 + (8 << 20))  # headroom

    grid = (B, q_split, nq_per)

    def build(single_buffer_invariants):
        # Grid-invariant weights/biases are fetched once; a single VMEM buffer
        # suffices -> halves their resident footprint (biggest win on v7x).
        inv_mode = pl.Buffered(1) if single_buffer_invariants else None

        def const_spec(shape):
            zeros = (0,) * len(shape)
            return pl.BlockSpec(shape, lambda b, h, qi: zeros,
                                pipeline_mode=inv_mode)

        in_specs = [
            pl.BlockSpec((1, Cq, tq),
                         lambda b, h, qi: (b, 0, h * nq_per + qi)),       # x
            pl.BlockSpec((1, Cc, Lc), lambda b, h, qi: (b, 0, 0)),        # cond
            const_spec((E, Cq)), const_spec((E, 1)),                      # query
            const_spec((2 * E, Cc)), const_spec((2 * E, 1)),              # K|V fused
            const_spec((Cq, E)), const_spec((Cq, 1)),                     # out proj
        ]
        return pl.pallas_call(
            cross_attention_kernel,
            out_shape=jax.ShapeDtypeStruct((B, Cq, Lq_pad), out_dtype),
            grid_spec=pltpu.PrefetchScalarGridSpec(
                num_scalar_prefetch=0,
                grid=grid,
                in_specs=in_specs,
                out_specs=pl.BlockSpec(
                    (1, Cq, tq), lambda b, h, qi: (b, 0, h * nq_per + qi)),
                scratch_shapes=[
                    pltpu.VMEM((Lc, E), bf16),    # K^T cache (per batch/half)
                    pltpu.VMEM((E, Lc), bf16),    # V cache
                ],
            ),
            compiler_params=pltpu.CompilerParams(
                # batch / q-half axes may split across cores; qi carries the
                # K/V scratch dependency so it stays in-order ("arbitrary").
                dimension_semantics=("parallel", "parallel", "arbitrary"),
                vmem_limit_bytes=vmem_limit,
            ),
        )(x_p, cond_ncw, wq, bq, wkv, bkv, wo, bo)

    try:
        out = build(True)
    except Exception:
        # pipeline_mode=pl.Buffered(1) unsupported on this jax build ->
        # fall back to default double-buffering (correctness unaffected).
        out = build(False)

    return out if Lq_pad == Lq else out[:, :, :Lq]


def init_params(key, query_dim, cond_dim, embed_dim):
    """Deterministic init mimicking Conv1d(k=1) weight shapes (out, in)."""
    ks = jax.random.split(key, 10)

    def u(k, shape, fan_in):
        bound = 1.0 / (fan_in ** 0.5)
        return jax.random.uniform(k, shape, jnp.float32, -bound, bound)

    return {
        "wq": u(ks[0], (embed_dim, query_dim), query_dim),
        "bq": u(ks[1], (embed_dim,), query_dim),
        "wc": u(ks[2], (embed_dim, cond_dim), cond_dim),
        "bc": u(ks[3], (embed_dim,), cond_dim),
        "wk": u(ks[4], (embed_dim, embed_dim), embed_dim),
        "bk": u(ks[5], (embed_dim,), embed_dim),
        "wv": u(ks[6], (embed_dim, embed_dim), embed_dim),
        "bv": u(ks[7], (embed_dim,), embed_dim),
        "wo": u(ks[8], (query_dim, embed_dim), embed_dim),
        "bo": u(ks[9], (query_dim,), embed_dim),
    }


def cross_attention_ref(x_ncw, cond_ncw, p):
    """Plain-JAX f32 reference of the PyTorch forward (NCW layout)."""
    def conv1x1(x, w, b):   # x: (B, Cin, L), w: (Cout, Cin), b: (Cout,)
        return jnp.einsum("oc,bcl->bol", w, x) + b[None, :, None]
    q = jnp.transpose(conv1x1(x_ncw, p["wq"], p["bq"]), (0, 2, 1))        # (B,Lq,E)
    cp = conv1x1(cond_ncw, p["wc"], p["bc"])                              # (B,E,Lc)
    k = jnp.transpose(conv1x1(cp, p["wk"], p["bk"]), (0, 2, 1))           # (B,Lc,E)
    v = jnp.transpose(conv1x1(cp, p["wv"], p["bv"]), (0, 2, 1))           # (B,Lc,E)
    s = jnp.einsum("bqe,bke->bqk", q, k) / (q.shape[-1] ** 0.5)
    a = jax.nn.softmax(s, axis=-1)
    o = jnp.transpose(jnp.einsum("bqk,bke->bqe", a, v), (0, 2, 1))        # (B,E,Lq)
    return conv1x1(o, p["wo"], p["bo"]) + x_ncw


if __name__ == "__main__":
    B, query_dim, cond_dim, embed_dim = 2, 4, 8, 32
    Lq, Lc = 16, 8

    key = jax.random.PRNGKey(0)
    kx, kc, kp = jax.random.split(key, 3)
    x = jax.random.normal(kx, (B, query_dim, Lq), jnp.float32)
    cond = jax.random.normal(kc, (B, cond_dim, Lc), jnp.float32)
    params = init_params(kp, query_dim, cond_dim, embed_dim)

    out = cross_attention_pallas(x, cond, params)
    out = jax.block_until_ready(out)

    ref = cross_attention_ref(x, cond, params)
    assert out.shape == (B, query_dim, Lq)
    # bf16 MXU operands + fused cond_proj weights + approx reciprocal =>
    # bf16-level deviation from the f32 reference.
    assert jnp.allclose(out, ref, atol=2e-2, rtol=2e-2), "mismatch vs reference"

    print("KERNEL_OK")
</pallas_src>

<mosaic_0001>
module attributes {stable_mosaic.version = 11 : i64} {
  func.func @cross_attention_kernel(%arg0: i32, %arg1: i32, %arg2: i32, %arg3: memref<1x4x128xf32, #tpu.memory_space<vmem>>, %arg4: memref<1x8x8xf32, #tpu.memory_space<vmem>>, %arg5: memref<32x4xbf16, #tpu.memory_space<vmem>>, %arg6: memref<32x1xf32, #tpu.memory_space<vmem>>, %arg7: memref<64x8xbf16, #tpu.memory_space<vmem>>, %arg8: memref<64x1xf32, #tpu.memory_space<vmem>>, %arg9: memref<4x32xbf16, #tpu.memory_space<vmem>>, %arg10: memref<4x1xf32, #tpu.memory_space<vmem>>, %arg11: memref<1x4x128xf32, #tpu.memory_space<vmem>>, %arg12: memref<8x32xbf16, #tpu.memory_space<vmem>>, %arg13: memref<32x8xbf16, #tpu.memory_space<vmem>>) attributes {dimension_semantics = [#tpu.dimension_semantics<parallel>, #tpu.dimension_semantics<parallel>, #tpu.dimension_semantics<arbitrary>], iteration_bounds = array<i64: 2, 1, 1>, scalar_prefetch = 0 : i64, scratch_operands = 2 : i64, tpu.core_type = #tpu.core_type<tc>, window_params = [{transform_indices = @transform_0, window_bounds = array<i64: 1, 4, 128>}, {transform_indices = @transform_1, window_bounds = array<i64: 1, 8, 8>}, {pipeline_mode = #tpu.pipeline_mode<synchronous>, transform_indices = @transform_2, window_bounds = array<i64: 32, 4>}, {pipeline_mode = #tpu.pipeline_mode<synchronous>, transform_indices = @transform_3, window_bounds = array<i64: 32, 1>}, {pipeline_mode = #tpu.pipeline_mode<synchronous>, transform_indices = @transform_4, window_bounds = array<i64: 64, 8>}, {pipeline_mode = #tpu.pipeline_mode<synchronous>, transform_indices = @transform_5, window_bounds = array<i64: 64, 1>}, {pipeline_mode = #tpu.pipeline_mode<synchronous>, transform_indices = @transform_6, window_bounds = array<i64: 4, 32>}, {pipeline_mode = #tpu.pipeline_mode<synchronous>, transform_indices = @transform_7, window_bounds = array<i64: 4, 1>}, {transform_indices = @transform_8, window_bounds = array<i64: 1, 4, 128>}]} {
    %c0_i32 = arith.constant 0 : i32
    %0 = arith.cmpi eq, %arg2, %c0_i32 : i32
    %1 = arith.extui %0 : i1 to i32
    %c0_i32_0 = arith.constant 0 : i32
    %2 = arith.cmpi ne, %1, %c0_i32_0 : i32
    scf.if %2 {
      %c0_23 = arith.constant 0 : index
      %c0_24 = arith.constant 0 : index
      %c0_25 = arith.constant 0 : index
      %37 = vector.load %arg4[%c0_23, %c0_24, %c0_25] : memref<1x8x8xf32, #tpu.memory_space<vmem>>, vector<1x8x8xf32>
      %38 = vector.shape_cast %37 : vector<1x8x8xf32> to vector<8x8xf32>
      %39 = arith.truncf %38 : vector<8x8xf32> to vector<8x8xbf16>
      %c0_26 = arith.constant 0 : index
      %c0_27 = arith.constant 0 : index
      %40 = vector.load %arg7[%c0_26, %c0_27] : memref<64x8xbf16, #tpu.memory_space<vmem>>, vector<64x8xbf16>
      %cst_28 = arith.constant dense<0.000000e+00> : vector<64x8xf32>
      %41 = tpu.matmul %40, %39, %cst_28 {dimension_numbers = #tpu.dot_dimension_numbers<[1], [0], [0], [1], [0, 0, 1, 1], [], []>} : vector<64x8xbf16>, vector<8x8xbf16>, vector<64x8xf32> -> vector<64x8xf32>
      %c0_29 = arith.constant 0 : index
      %c0_30 = arith.constant 0 : index
      %42 = vector.load %arg8[%c0_29, %c0_30] : memref<64x1xf32, #tpu.memory_space<vmem>>, vector<64x1xf32>
      %43 = vector.broadcast %42 : vector<64x1xf32> to vector<64x8xf32>
      %44 = arith.addf %41, %43 : vector<64x8xf32>
      %45 = vector.extract_strided_slice %44 {offsets = [0, 0], sizes = [32, 8], strides = [1, 1]} : vector<64x8xf32> to vector<32x8xf32>
      %46 = tpu.transpose %45, [1, 0] : vector<32x8xf32> -> vector<8x32xf32>
      %47 = arith.truncf %46 : vector<8x32xf32> to vector<8x32xbf16>
      %c0_31 = arith.constant 0 : index
      %c0_32 = arith.constant 0 : index
      %48 = vector.load %arg12[%c0_31, %c0_32] : memref<8x32xbf16, #tpu.memory_space<vmem>>, vector<8x32xbf16>
      tpu.vector_store %arg12[%c0_31, %c0_32], %47 {strides = array<i32>} : memref<8x32xbf16, #tpu.memory_space<vmem>>, vector<8x32xbf16>,
      %49 = vector.extract_strided_slice %44 {offsets = [32, 0], sizes = [32, 8], strides = [1, 1]} : vector<64x8xf32> to vector<32x8xf32>
      %50 = arith.truncf %49 : vector<32x8xf32> to vector<32x8xbf16>
      %c0_33 = arith.constant 0 : index
      %c0_34 = arith.constant 0 : index
      %51 = vector.load %arg13[%c0_33, %c0_34] : memref<32x8xbf16, #tpu.memory_space<vmem>>, vector<32x8xbf16>
      tpu.vector_store %arg13[%c0_33, %c0_34], %50 {strides = array<i32>} : memref<32x8xbf16, #tpu.memory_space<vmem>>, vector<32x8xbf16>,
    } else {
    }
    %c0 = arith.constant 0 : index
    %c0_1 = arith.constant 0 : index
    %c0_2 = arith.constant 0 : index
    %3 = vector.load %arg3[%c0, %c0_1, %c0_2] : memref<1x4x128xf32, #tpu.memory_space<vmem>>, vector<1x4x128xf32>
    %4 = vector.shape_cast %3 : vector<1x4x128xf32> to vector<4x128xf32>
    %5 = arith.truncf %4 : vector<4x128xf32> to vector<4x128xbf16>
    %c0_3 = arith.constant 0 : index
    %c0_4 = arith.constant 0 : index
    %6 = vector.load %arg5[%c0_3, %c0_4] : memref<32x4xbf16, #tpu.memory_space<vmem>>, vector<32x4xbf16>
    %cst = arith.constant dense<0.000000e+00> : vector<32x128xf32>
    %7 = tpu.matmul %6, %5, %cst {dimension_numbers = #tpu.dot_dimension_numbers<[1], [0], [0], [1], [0, 0, 1, 1], [], []>} : vector<32x4xbf16>, vector<4x128xbf16>, vector<32x128xf32> -> vector<32x128xf32>
    %c0_5 = arith.constant 0 : index
    %c0_6 = arith.constant 0 : index
    %8 = vector.load %arg6[%c0_5, %c0_6] : memref<32x1xf32, #tpu.memory_space<vmem>>, vector<32x1xf32>
    %9 = vector.broadcast %8 : vector<32x1xf32> to vector<32x128xf32>
    %10 = arith.addf %7, %9 : vector<32x128xf32>
    %11 = arith.truncf %10 : vector<32x128xf32> to vector<32x128xbf16>
    %c0_7 = arith.constant 0 : index
    %c0_8 = arith.constant 0 : index
    %12 = vector.load %arg12[%c0_7, %c0_8] : memref<8x32xbf16, #tpu.memory_space<vmem>>, vector<8x32xbf16>
    %cst_9 = arith.constant dense<0.000000e+00> : vector<8x128xf32>
    %13 = tpu.matmul %12, %11, %cst_9 {dimension_numbers = #tpu.dot_dimension_numbers<[1], [0], [0], [1], [0, 0, 1, 1], [], []>} : vector<8x32xbf16>, vector<32x128xbf16>, vector<8x128xf32> -> vector<8x128xf32>
    %cst_10 = arith.constant dense<0xFF800000> : vector<128xf32>
    %14 = vector.multi_reduction <maximumf>, %13, %cst_10 [0] : vector<8x128xf32> to vector<128xf32>
    %15 = vector.shape_cast %14 : vector<128xf32> to vector<1x128xf32>
    %16 = vector.broadcast %15 : vector<1x128xf32> to vector<8x128xf32>
    %17 = arith.subf %13, %16 : vector<8x128xf32>
    %18 = math.exp %17 : vector<8x128xf32>
    %cst_11 = arith.constant dense<0.000000e+00> : vector<128xf32>
    %19 = vector.multi_reduction <add>, %18, %cst_11 [0] : vector<8x128xf32> to vector<128xf32>
    %20 = vector.shape_cast %19 : vector<128xf32> to vector<1x128xf32>
    %c0_12 = arith.constant 0 : index
    %c0_13 = arith.constant 0 : index
    %21 = vector.load %arg13[%c0_12, %c0_13] : memref<32x8xbf16, #tpu.memory_space<vmem>>, vector<32x8xbf16>
    %22 = arith.truncf %18 : vector<8x128xf32> to vector<8x128xbf16>
    %cst_14 = arith.constant dense<0.000000e+00> : vector<32x128xf32>
    %23 = tpu.matmul %21, %22, %cst_14 {dimension_numbers = #tpu.dot_dimension_numbers<[1], [0], [0], [1], [0, 0, 1, 1], [], []>} : vector<32x8xbf16>, vector<8x128xbf16>, vector<32x128xf32> -> vector<32x128xf32>
    %24 = tpu.reciprocal %20 {approx = true} : vector<1x128xf32> -> vector<1x128xf32>
    %25 = vector.broadcast %24 : vector<1x128xf32> to vector<32x128xf32>
    %26 = arith.mulf %23, %25 : vector<32x128xf32>
    %c0_15 = arith.constant 0 : index
    %c0_16 = arith.constant 0 : index
    %27 = vector.load %arg9[%c0_15, %c0_16] : memref<4x32xbf16, #tpu.memory_space<vmem>>, vector<4x32xbf16>
    %28 = arith.truncf %26 : vector<32x128xf32> to vector<32x128xbf16>
    %cst_17 = arith.constant dense<0.000000e+00> : vector<4x128xf32>
    %29 = tpu.matmul %27, %28, %cst_17 {dimension_numbers = #tpu.dot_dimension_numbers<[1], [0], [0], [1], [0, 0, 1, 1], [], []>} : vector<4x32xbf16>, vector<32x128xbf16>, vector<4x128xf32> -> vector<4x128xf32>
    %c0_18 = arith.constant 0 : index
    %c0_19 = arith.constant 0 : index
    %30 = vector.load %arg10[%c0_18, %c0_19] : memref<4x1xf32, #tpu.memory_space<vmem>>, vector<4x1xf32>
    %31 = vector.broadcast %30 : vector<4x1xf32> to vector<4x128xf32>
    %32 = arith.addf %29, %31 : vector<4x128xf32>
    %33 = arith.addf %32, %4 : vector<4x128xf32>
    %c0_20 = arith.constant 0 : index
    %c0_21 = arith.constant 0 : index
    %c0_22 = arith.constant 0 : index
    %34 = vector.load %arg11[%c0_20, %c0_21, %c0_22] : memref<1x4x128xf32, #tpu.memory_space<vmem>>, vector<1x4x128xf32>
    %35 = vector.shape_cast %34 : vector<1x4x128xf32> to vector<4x128xf32>
    %36 = vector.shape_cast %33 : vector<4x128xf32> to vector<1x4x128xf32>
    tpu.vector_store %arg11[%c0_20, %c0_21, %c0_22], %36 {strides = array<i32>} : memref<1x4x128xf32, #tpu.memory_space<vmem>>, vector<1x4x128xf32>,
    return
  }
  func.func @transform_0(%arg0: i32, %arg1: i32, %arg2: i32) -> (i32, i32, i32) {
    %c1_i32 = arith.constant 1 : i32
    %0 = arith.muli %arg1, %c1_i32 : i32
    %1 = arith.addi %0, %arg2 : i32
    %c0_i32 = arith.constant 0 : i32
    %c0_i32_0 = arith.constant 0 : i32
    return %arg0, %c0_i32, %1 : i32, i32, i32
  }
  func.func @transform_1(%arg0: i32, %arg1: i32, %arg2: i32) -> (i32, i32, i32) {
    %c0_i32 = arith.constant 0 : i32
    %c0_i32_0 = arith.constant 0 : i32
    %c0_i32_1 = arith.constant 0 : i32
    return %arg0, %c0_i32, %c0_i32_0 : i32, i32, i32
  }
  func.func @transform_2(%arg0: i32, %arg1: i32, %arg2: i32) -> (i32, i32) {
    %c0_i32 = arith.constant 0 : i32
    %c0_i32_0 = arith.constant 0 : i32
    %c0_i32_1 = arith.constant 0 : i32
    return %c0_i32, %c0_i32_0 : i32, i32
  }
  func.func @transform_3(%arg0: i32, %arg1: i32, %arg2: i32) -> (i32, i32) {
    %c0_i32 = arith.constant 0 : i32
    %c0_i32_0 = arith.constant 0 : i32
    %c0_i32_1 = arith.constant 0 : i32
    return %c0_i32, %c0_i32_0 : i32, i32
  }
  func.func @transform_4(%arg0: i32, %arg1: i32, %arg2: i32) -> (i32, i32) {
    %c0_i32 = arith.constant 0 : i32
    %c0_i32_0 = arith.constant 0 : i32
    %c0_i32_1 = arith.constant 0 : i32
    return %c0_i32, %c0_i32_0 : i32, i32
  }
  func.func @transform_5(%arg0: i32, %arg1: i32, %arg2: i32) -> (i32, i32) {
    %c0_i32 = arith.constant 0 : i32
    %c0_i32_0 = arith.constant 0 : i32
    %c0_i32_1 = arith.constant 0 : i32
    return %c0_i32, %c0_i32_0 : i32, i32
  }
  func.func @transform_6(%arg0: i32, %arg1: i32, %arg2: i32) -> (i32, i32) {
    %c0_i32 = arith.constant 0 : i32
    %c0_i32_0 = arith.constant 0 : i32
    %c0_i32_1 = arith.constant 0 : i32
    return %c0_i32, %c0_i32_0 : i32, i32
  }
  func.func @transform_7(%arg0: i32, %arg1: i32, %arg2: i32) -> (i32, i32) {
    %c0_i32 = arith.constant 0 : i32
    %c0_i32_0 = arith.constant 0 : i32
    %c0_i32_1 = arith.constant 0 : i32
    return %c0_i32, %c0_i32_0 : i32, i32
  }
  func.func @transform_8(%arg0: i32, %arg1: i32, %arg2: i32) -> (i32, i32, i32) {
    %c1_i32 = arith.constant 1 : i32
    %0 = arith.muli %arg1, %c1_i32 : i32
    %1 = arith.addi %0, %arg2 : i32
    %c0_i32 = arith.constant 0 : i32
    %c0_i32_0 = arith.constant 0 : i32
    return %arg0, %c0_i32, %1 : i32, i32, i32
  }
}

module attributes {stable_mosaic.version = 11 : i64} {
  func.func @cross_attention_kernel(%arg0: i32, %arg1: i32, %arg2: i32, %arg3: memref<1x4x128xf32, #tpu.memory_space<vmem>>, %arg4: memref<1x8x8xf32, #tpu.memory_space<vmem>>, %arg5: memref<32x4xbf16, #tpu.memory_space<vmem>>, %arg6: memref<32x1xf32, #tpu.memory_space<vmem>>, %arg7: memref<64x8xbf16, #tpu.memory_space<vmem>>, %arg8: memref<64x1xf32, #tpu.memory_space<vmem>>, %arg9: memref<4x32xbf16, #tpu.memory_space<vmem>>, %arg10: memref<4x1xf32, #tpu.memory_space<vmem>>, %arg11: memref<1x4x128xf32, #tpu.memory_space<vmem>>, %arg12: memref<8x32xbf16, #tpu.memory_space<vmem>>, %arg13: memref<32x8xbf16, #tpu.memory_space<vmem>>) attributes {dimension_semantics = [#tpu.dimension_semantics<parallel>, #tpu.dimension_semantics<parallel>, #tpu.dimension_semantics<arbitrary>], iteration_bounds = array<i64: 2, 1, 1>, scalar_prefetch = 0 : i64, scratch_operands = 2 : i64, tpu.core_type = #tpu.core_type<tc>, window_params = [{transform_indices = @transform_0, window_bounds = array<i64: 1, 4, 128>}, {transform_indices = @transform_1, window_bounds = array<i64: 1, 8, 8>}, {pipeline_mode = #tpu.pipeline_mode<synchronous>, transform_indices = @transform_2, window_bounds = array<i64: 32, 4>}, {pipeline_mode = #tpu.pipeline_mode<synchronous>, transform_indices = @transform_3, window_bounds = array<i64: 32, 1>}, {pipeline_mode = #tpu.pipeline_mode<synchronous>, transform_indices = @transform_4, window_bounds = array<i64: 64, 8>}, {pipeline_mode = #tpu.pipeline_mode<synchronous>, transform_indices = @transform_5, window_bounds = array<i64: 64, 1>}, {pipeline_mode = #tpu.pipeline_mode<synchronous>, transform_indices = @transform_6, window_bounds = array<i64: 4, 32>}, {pipeline_mode = #tpu.pipeline_mode<synchronous>, transform_indices = @transform_7, window_bounds = array<i64: 4, 1>}, {transform_indices = @transform_8, window_bounds = array<i64: 1, 4, 128>}]} {
    %c0_i32 = arith.constant 0 : i32
    %0 = arith.cmpi eq, %arg2, %c0_i32 : i32
    %1 = arith.extui %0 : i1 to i32
    %c0_i32_0 = arith.constant 0 : i32
    %2 = arith.cmpi ne, %1, %c0_i32_0 : i32
    scf.if %2 {
      %c0_23 = arith.constant 0 : index
      %c0_24 = arith.constant 0 : index
      %c0_25 = arith.constant 0 : index
      %37 = vector.load %arg4[%c0_23, %c0_24, %c0_25] : memref<1x8x8xf32, #tpu.memory_space<vmem>>, vector<1x8x8xf32>
      %38 = vector.shape_cast %37 : vector<1x8x8xf32> to vector<8x8xf32>
      %39 = arith.truncf %38 : vector<8x8xf32> to vector<8x8xbf16>
      %c0_26 = arith.constant 0 : index
      %c0_27 = arith.constant 0 : index
      %40 = vector.load %arg7[%c0_26, %c0_27] : memref<64x8xbf16, #tpu.memory_space<vmem>>, vector<64x8xbf16>
      %cst_28 = arith.constant dense<0.000000e+00> : vector<64x8xf32>
      %41 = tpu.matmul %40, %39, %cst_28 {dimension_numbers = #tpu.dot_dimension_numbers<[1], [0], [0], [1], [0, 0, 1, 1], [], []>} : vector<64x8xbf16>, vector<8x8xbf16>, vector<64x8xf32> -> vector<64x8xf32>
      %c0_29 = arith.constant 0 : index
      %c0_30 = arith.constant 0 : index
      %42 = vector.load %arg8[%c0_29, %c0_30] : memref<64x1xf32, #tpu.memory_space<vmem>>, vector<64x1xf32>
      %43 = vector.broadcast %42 : vector<64x1xf32> to vector<64x8xf32>
      %44 = arith.addf %41, %43 : vector<64x8xf32>
      %45 = vector.extract_strided_slice %44 {offsets = [0, 0], sizes = [32, 8], strides = [1, 1]} : vector<64x8xf32> to vector<32x8xf32>
      %46 = tpu.transpose %45, [1, 0] : vector<32x8xf32> -> vector<8x32xf32>
      %47 = arith.truncf %46 : vector<8x32xf32> to vector<8x32xbf16>
      %c0_31 = arith.constant 0 : index
      %c0_32 = arith.constant 0 : index
      %48 = vector.load %arg12[%c0_31, %c0_32] : memref<8x32xbf16, #tpu.memory_space<vmem>>, vector<8x32xbf16>
      tpu.vector_store %arg12[%c0_31, %c0_32], %47 {strides = array<i32>} : memref<8x32xbf16, #tpu.memory_space<vmem>>, vector<8x32xbf16>,
      %49 = vector.extract_strided_slice %44 {offsets = [32, 0], sizes = [32, 8], strides = [1, 1]} : vector<64x8xf32> to vector<32x8xf32>
      %50 = arith.truncf %49 : vector<32x8xf32> to vector<32x8xbf16>
      %c0_33 = arith.constant 0 : index
      %c0_34 = arith.constant 0 : index
      %51 = vector.load %arg13[%c0_33, %c0_34] : memref<32x8xbf16, #tpu.memory_space<vmem>>, vector<32x8xbf16>
      tpu.vector_store %arg13[%c0_33, %c0_34], %50 {strides = array<i32>} : memref<32x8xbf16, #tpu.memory_space<vmem>>, vector<32x8xbf16>,
    } else {
    }
    %c0 = arith.constant 0 : index
    %c0_1 = arith.constant 0 : index
    %c0_2 = arith.constant 0 : index
    %3 = vector.load %arg3[%c0, %c0_1, %c0_2] : memref<1x4x128xf32, #tpu.memory_space<vmem>>, vector<1x4x128xf32>
    %4 = vector.shape_cast %3 : vector<1x4x128xf32> to vector<4x128xf32>
    %5 = arith.truncf %4 : vector<4x128xf32> to vector<4x128xbf16>
    %c0_3 = arith.constant 0 : index
    %c0_4 = arith.constant 0 : index
    %6 = vector.load %arg5[%c0_3, %c0_4] : memref<32x4xbf16, #tpu.memory_space<vmem>>, vector<32x4xbf16>
    %cst = arith.constant dense<0.000000e+00> : vector<32x128xf32>
    %7 = tpu.matmul %6, %5, %cst {dimension_numbers = #tpu.dot_dimension_numbers<[1], [0], [0], [1], [0, 0, 1, 1], [], []>} : vector<32x4xbf16>, vector<4x128xbf16>, vector<32x128xf32> -> vector<32x128xf32>
    %c0_5 = arith.constant 0 : index
    %c0_6 = arith.constant 0 : index
    %8 = vector.load %arg6[%c0_5, %c0_6] : memref<32x1xf32, #tpu.memory_space<vmem>>, vector<32x1xf32>
    %9 = vector.broadcast %8 : vector<32x1xf32> to vector<32x128xf32>
    %10 = arith.addf %7, %9 : vector<32x128xf32>
    %11 = arith.truncf %10 : vector<32x128xf32> to vector<32x128xbf16>
    %c0_7 = arith.constant 0 : index
    %c0_8 = arith.constant 0 : index
    %12 = vector.load %arg12[%c0_7, %c0_8] : memref<8x32xbf16, #tpu.memory_space<vmem>>, vector<8x32xbf16>
    %cst_9 = arith.constant dense<0.000000e+00> : vector<8x128xf32>
    %13 = tpu.matmul %12, %11, %cst_9 {dimension_numbers = #tpu.dot_dimension_numbers<[1], [0], [0], [1], [0, 0, 1, 1], [], []>} : vector<8x32xbf16>, vector<32x128xbf16>, vector<8x128xf32> -> vector<8x128xf32>
    %cst_10 = arith.constant dense<0xFF800000> : vector<128xf32>
    %14 = vector.multi_reduction <maximumf>, %13, %cst_10 [0] : vector<8x128xf32> to vector<128xf32>
    %15 = vector.shape_cast %14 : vector<128xf32> to vector<1x128xf32>
    %16 = vector.broadcast %15 : vector<1x128xf32> to vector<8x128xf32>
    %17 = arith.subf %13, %16 : vector<8x128xf32>
    %18 = math.exp %17 : vector<8x128xf32>
    %cst_11 = arith.constant dense<0.000000e+00> : vector<128xf32>
    %19 = vector.multi_reduction <add>, %18, %cst_11 [0] : vector<8x128xf32> to vector<128xf32>
    %20 = vector.shape_cast %19 : vector<128xf32> to vector<1x128xf32>
    %c0_12 = arith.constant 0 : index
    %c0_13 = arith.constant 0 : index
    %21 = vector.load %arg13[%c0_12, %c0_13] : memref<32x8xbf16, #tpu.memory_space<vmem>>, vector<32x8xbf16>
    %22 = arith.truncf %18 : vector<8x128xf32> to vector<8x128xbf16>
    %cst_14 = arith.constant dense<0.000000e+00> : vector<32x128xf32>
    %23 = tpu.matmul %21, %22, %cst_14 {dimension_numbers = #tpu.dot_dimension_numbers<[1], [0], [0], [1], [0, 0, 1, 1], [], []>} : vector<32x8xbf16>, vector<8x128xbf16>, vector<32x128xf32> -> vector<32x128xf32>
    %24 = tpu.reciprocal %20 {approx = true} : vector<1x128xf32> -> vector<1x128xf32>
    %25 = vector.broadcast %24 : vector<1x128xf32> to vector<32x128xf32>
    %26 = arith.mulf %23, %25 : vector<32x128xf32>
    %c0_15 = arith.constant 0 : index
    %c0_16 = arith.constant 0 : index
    %27 = vector.load %arg9[%c0_15, %c0_16] : memref<4x32xbf16, #tpu.memory_space<vmem>>, vector<4x32xbf16>
    %28 = arith.truncf %26 : vector<32x128xf32> to vector<32x128xbf16>
    %cst_17 = arith.constant dense<0.000000e+00> : vector<4x128xf32>
    %29 = tpu.matmul %27, %28, %cst_17 {dimension_numbers = #tpu.dot_dimension_numbers<[1], [0], [0], [1], [0, 0, 1, 1], [], []>} : vector<4x32xbf16>, vector<32x128xbf16>, vector<4x128xf32> -> vector<4x128xf32>
    %c0_18 = arith.constant 0 : index
    %c0_19 = arith.constant 0 : index
    %30 = vector.load %arg10[%c0_18, %c0_19] : memref<4x1xf32, #tpu.memory_space<vmem>>, vector<4x1xf32>
    %31 = vector.broadcast %30 : vector<4x1xf32> to vector<4x128xf32>
    %32 = arith.addf %29, %31 : vector<4x128xf32>
    %33 = arith.addf %32, %4 : vector<4x128xf32>
    %c0_20 = arith.constant 0 : index
    %c0_21 = arith.constant 0 : index
    %c0_22 = arith.constant 0 : index
    %34 = vector.load %arg11[%c0_20, %c0_21, %c0_22] : memref<1x4x128xf32, #tpu.memory_space<vmem>>, vector<1x4x128xf32>
    %35 = vector.shape_cast %34 : vector<1x4x128xf32> to vector<4x128xf32>
    %36 = vector.shape_cast %33 : vector<4x128xf32> to vector<1x4x128xf32>
    tpu.vector_store %arg11[%c0_20, %c0_21, %c0_22], %36 {strides = array<i32>} : memref<1x4x128xf32, #tpu.memory_space<vmem>>, vector<1x4x128xf32>,
    return
  }
  func.func @transform_0(%arg0: i32, %arg1: i32, %arg2: i32) -> (i32, i32, i32) {
    %c1_i32 = arith.constant 1 : i32
    %0 = arith.muli %arg1, %c1_i32 : i32
    %1 = arith.addi %0, %arg2 : i32
    %c0_i32 = arith.constant 0 : i32
    %c0_i32_0 = arith.constant 0 : i32
    return %arg0, %c0_i32, %1 : i32, i32, i32
  }
  func.func @transform_1(%arg0: i32, %arg1: i32, %arg2: i32) -> (i32, i32, i32) {
    %c0_i32 = arith.constant 0 : i32
    %c0_i32_0 = arith.constant 0 : i32
    %c0_i32_1 = arith.constant 0 : i32
    return %arg0, %c0_i32, %c0_i32_0 : i32, i32, i32
  }
  func.func @transform_2(%arg0: i32, %arg1: i32, %arg2: i32) -> (i32, i32) {
    %c0_i32 = arith.constant 0 : i32
    %c0_i32_0 = arith.constant 0 : i32
    %c0_i32_1 = arith.constant 0 : i32
    return %c0_i32, %c0_i32_0 : i32, i32
  }
  func.func @transform_3(%arg0: i32, %arg1: i32, %arg2: i32) -> (i32, i32) {
    %c0_i32 = arith.constant 0 : i32
    %c0_i32_0 = arith.constant 0 : i32
    %c0_i32_1 = arith.constant 0 : i32
    return %c0_i32, %c0_i32_0 : i32, i32
  }
  func.func @transform_4(%arg0: i32, %arg1: i32, %arg2: i32) -> (i32, i32) {
    %c0_i32 = arith.constant 0 : i32
    %c0_i32_0 = arith.constant 0 : i32
    %c0_i32_1 = arith.constant 0 : i32
    return %c0_i32, %c0_i32_0 : i32, i32
  }
  func.func @transform_5(%arg0: i32, %arg1: i32, %arg2: i32) -> (i32, i32) {
    %c0_i32 = arith.constant 0 : i32
    %c0_i32_0 = arith.constant 0 : i32
    %c0_i32_1 = arith.constant 0 : i32
    return %c0_i32, %c0_i32_0 : i32, i32
  }
  func.func @transform_6(%arg0: i32, %arg1: i32, %arg2: i32) -> (i32, i32) {
    %c0_i32 = arith.constant 0 : i32
    %c0_i32_0 = arith.constant 0 : i32
    %c0_i32_1 = arith.constant 0 : i32
    return %c0_i32, %c0_i32_0 : i32, i32
  }
  func.func @transform_7(%arg0: i32, %arg1: i32, %arg2: i32) -> (i32, i32) {
    %c0_i32 = arith.constant 0 : i32
    %c0_i32_0 = arith.constant 0 : i32
    %c0_i32_1 = arith.constant 0 : i32
    return %c0_i32, %c0_i32_0 : i32, i32
  }
  func.func @transform_8(%arg0: i32, %arg1: i32, %arg2: i32) -> (i32, i32, i32) {
    %c1_i32 = arith.constant 1 : i32
    %0 = arith.muli %arg1, %c1_i32 : i32
    %1 = arith.addi %0, %arg2 : i32
    %c0_i32 = arith.constant 0 : i32
    %c0_i32_0 = arith.constant 0 : i32
    return %arg0, %c0_i32, %1 : i32, i32, i32
  }
}

</mosaic_0001>

<llo_original>
// kernel: tpu_custom_call.1
$region0: #{tpu_custom_call.1}
  #allocation0 [shape = 'u32[]', space=smem, size = 0x4, offset = 0x4, fixed_abs, tag = 'smem constant byte address 0x4 - core index']
  #allocation1 [shape = 'u32[144,128]{1,0:T(1,128)}', space=vmem, size = 0x12000, scoped, tag = 'internal scratch']
  #allocation2 [shape = 'bf16[8,32]{1,0:T(8,128)(2,1)}', space=vmem, size = 0x800, scoped, tag = 'scratch operand']
  #allocation3 [shape = 'bf16[32,8]{1,0:T(8,128)(2,1)}', space=vmem, size = 0x2000, scoped, tag = 'scratch operand']
  %s0 = inlined_call_operand.vmem [shape: f32[2,4,128], index: 0, kind: input, shape index: {}]
  %s1 = inlined_call_operand.vmem [shape: f32[2,8,8], index: 1, kind: input, shape index: {}]
  %s2 = inlined_call_operand.vmem [shape: bf16[32,4], index: 2, kind: input, shape index: {}]
  %s3 = inlined_call_operand.vmem [shape: f32[32,1], index: 3, kind: input, shape index: {}]
  %s4 = inlined_call_operand.vmem [shape: bf16[64,8], index: 4, kind: input, shape index: {}]
  %s5 = inlined_call_operand.vmem [shape: f32[64,1], index: 5, kind: input, shape index: {}]
  %s6 = inlined_call_operand.vmem [shape: bf16[4,32], index: 6, kind: input, shape index: {}]
  %s7 = inlined_call_operand.vmem [shape: f32[4,1], index: 7, kind: input, shape index: {}]
  %s8 = inlined_call_operand.hbm [shape: f32[2,4,128], index: 8, kind: output, shape index: {}]
  %s9 = sld [smem:[#allocation0]]
  $region69: #{tpu_custom_call.1} parent=0
    _
  %s11 = ssub.s32 1, %s9
  %s12 = scalar_select 0, %s11, %s9
  $region1: #{tpu_custom_call.1} parent=0
    #allocation4 [shape = 'u8[4096]{0}', space=vmem, size = 0x1000, scoped, tag = 'output window, operand 0']
    #allocation5 [shape = 's32[2]{0}', space=sflag, size = 0x8, scoped, tag = 'scoped memory for tpu_custom_call.1']
    %13 = vsyncpa [#allocation5], 0
    %s14 = scalar_lea.sflag [#allocation5], 1
    %15 = vsyncpa %s14, 0
    loop: start=0, step=1, limit=4
    $region2: #{tpu_custom_call.1} parent=1 // loop_pre_header
      _
    $region3: #{tpu_custom_call.1} parent=1 // loop_header
      %s17 = sphi 0, %s21
      %p18 = scmp.ge.s32.totalorder %s17, 4
      %s24 = sphi 0, %s43
      %s25 = sphi 0, %s39
      %s26 = sphi 0, %s35
      %s27 = sphi 0, %s24
      %s28 = sphi 0, %s25
      %s29 = sphi 0, %s26
      %s30 = sphi 0, %s27
      %s31 = sphi 0, %s28
      %s32 = sphi 0, %s29
      %s50 = sphi 0, %s52
      %s53 = sphi 0, %s50
      %s54 = sphi 0, %s53
      %s70 = sphi 0, %s54
      %s76 = sphi 0, %s78
      %s79 = sphi 0, %s76
      %s80 = sphi 0, %s79
      %s96 = sphi 0, %s80
      %s100 = sphi 0, %s100
      %s102 = sphi 0, %s100
      %s103 = sphi 0, %s102
      %s117 = sphi 0, %s103
      %s121 = sphi 0, %s121
      %s123 = sphi 0, %s121
      %s124 = sphi 0, %s123
      %s138 = sphi 0, %s124
      %s142 = sphi 0, %s142
      %s144 = sphi 0, %s142
      %s145 = sphi 0, %s144
      %s159 = sphi 0, %s145
      %s163 = sphi 0, %s163
      %s165 = sphi 0, %s163
      %s166 = sphi 0, %s165
      %s180 = sphi 0, %s166
      %s184 = sphi 0, %s184
      %s186 = sphi 0, %s184
      %s187 = sphi 0, %s186
      %s201 = sphi 0, %s187
      %s205 = sphi 0, %s205
      %s207 = sphi 0, %s205
      %s208 = sphi 0, %s207
      %s222 = sphi 0, %s208
      %s232 = sphi 0, %s234
      %s235 = sphi 0, %s232
      %s236 = sphi 0, %s235
      %s252 = sphi 0, %s236
    $region4: #{tpu_custom_call.1} parent=1 // loop_header_branch
      %20 = sbr.rel (%p18) target = $region8
    $region5: #{tpu_custom_call.1} parent=1 // loop_body
      %s22 = ssub.s32 %s17, 1
      %s23 = ssub.s32 %s17, 2
      %s33 = sadd.s32 1, %s26
      %p34 = scmp.ge.s32.totalorder %s33, 1
      %s35 = scalar_select %p34, 0, %s33
      %s36 = sadd.s32 1, %s25
      %s37 = scalar_select %p34, %s36, %s25
      %p38 = scmp.ge.s32.totalorder %s37, 1
      %s39 = scalar_select %p38, 0, %s37
      %s40 = sadd.s32 1, %s24
      %s41 = scalar_select %p38, %s40, %s24
      %p42 = scmp.ge.s32.totalorder %s41, 2
      %s43 = scalar_select %p42, 0, %s41
      %s44 = sadd.s32 %s25, %s26
      %s45 = sadd.s32 %s39, %s35
      %s46 = ssub.s32 %s24, %s43
      %s47 = ssub.s32 %s44, %s45
      %s48 = sor.u32 %s46, %s47
      %p49 = scmp.eq.s32.totalorder %s48, 0
      %s51 = sadd.s32 %s50, 1
      %s52 = scalar_select %p49, %s50, %s51
      %p55 = pneg %p49
      %p56 = scmp.eq.s32.totalorder %s17, 1
      %p57 = por %p55, %p56
      %p58 = scmp.ne.s32.totalorder %s50, %s53
      %p59 = scmp.eq.s32.totalorder %s17, 0
      %p60 = por %p58, %p59
      %p61 = scmp.ne.s32.totalorder %s50, %s53
      %p62 = scmp.eq.s32.totalorder %s22, 1
      %p63 = por %p61, %p62
      %p64 = scmp.ne.s32.totalorder %s53, %s54
      %p65 = scmp.eq.s32.totalorder %s22, 0
      %p66 = por %p64, %p65
      %p67 = scmp.ne.s32.totalorder %s53, %s54
      %p68 = scmp.eq.s32.totalorder %s23, 1
      %p69 = por %p67, %p68
      %p71 = scmp.ne.s32.totalorder %s54, %s70
      %p72 = scmp.eq.s32.totalorder %s23, 0
      %p73 = por %p71, %p72
      %s74 = ssub.s32 %s24, %s43
      %p75 = scmp.eq.s32.totalorder %s74, 0
      %s77 = sadd.s32 %s76, 1
      %s78 = scalar_select %p75, %s76, %s77
      %p81 = pneg %p75
      %p82 = scmp.eq.s32.totalorder %s17, 1
      %p83 = por %p81, %p82
      %p84 = scmp.ne.s32.totalorder %s76, %s79
      %p85 = scmp.eq.s32.totalorder %s17, 0
      %p86 = por %p84, %p85
      %p87 = scmp.ne.s32.totalorder %s76, %s79
      %p88 = scmp.eq.s32.totalorder %s22, 1
      %p89 = por %p87, %p88
      %p90 = scmp.ne.s32.totalorder %s79, %s80
      %p91 = scmp.eq.s32.totalorder %s22, 0
      %p92 = por %p90, %p91
      %p93 = scmp.ne.s32.totalorder %s79, %s80
      %p94 = scmp.eq.s32.totalorder %s23, 1
      %p95 = por %p93, %p94
      %p97 = scmp.ne.s32.totalorder %s80, %s96
      %p98 = scmp.eq.s32.totalorder %s23, 0
      %p99 = por %p97, %p98
      %s101 = sadd.s32 %s100, 1
      %p104 = scmp.eq.s32.totalorder %s17, 1
      %p105 = scmp.ne.s32.totalorder %s100, %s102
      %p106 = scmp.eq.s32.totalorder %s17, 0
      %p107 = por %p105, %p106
      %p108 = scmp.ne.s32.totalorder %s100, %s102
      %p109 = scmp.eq.s32.totalorder %s22, 1
      %p110 = por %p108, %p109
      %p111 = scmp.ne.s32.totalorder %s102, %s103
      %p112 = scmp.eq.s32.totalorder %s22, 0
      %p113 = por %p111, %p112
      %p114 = scmp.ne.s32.totalorder %s102, %s103
      %p115 = scmp.eq.s32.totalorder %s23, 1
      %p116 = por %p114, %p115
      %p118 = scmp.ne.s32.totalorder %s103, %s117
      %p119 = scmp.eq.s32.totalorder %s23, 0
      %p120 = por %p118, %p119
      %s122 = sadd.s32 %s121, 1
      %p125 = scmp.eq.s32.totalorder %s17, 1
      %p126 = scmp.ne.s32.totalorder %s121, %s123
      %p127 = scmp.eq.s32.totalorder %s17, 0
      %p128 = por %p126, %p127
      %p129 = scmp.ne.s32.totalorder %s121, %s123
      %p130 = scmp.eq.s32.totalorder %s22, 1
      %p131 = por %p129, %p130
      %p132 = scmp.ne.s32.totalorder %s123, %s124
      %p133 = scmp.eq.s32.totalorder %s22, 0
      %p134 = por %p132, %p133
      %p135 = scmp.ne.s32.totalorder %s123, %s124
      %p136 = scmp.eq.s32.totalorder %s23, 1
      %p137 = por %p135, %p136
      %p139 = scmp.ne.s32.totalorder %s124, %s138
      %p140 = scmp.eq.s32.totalorder %s23, 0
      %p141 = por %p139, %p140
      %s143 = sadd.s32 %s142, 1
      %p146 = scmp.eq.s32.totalorder %s17, 1
      %p147 = scmp.ne.s32.totalorder %s142, %s144
      %p148 = scmp.eq.s32.totalorder %s17, 0
      %p149 = por %p147, %p148
      %p150 = scmp.ne.s32.totalorder %s142, %s144
      %p151 = scmp.eq.s32.totalorder %s22, 1
      %p152 = por %p150, %p151
      %p153 = scmp.ne.s32.totalorder %s144, %s145
      %p154 = scmp.eq.s32.totalorder %s22, 0
      %p155 = por %p153, %p154
      %p156 = scmp.ne.s32.totalorder %s144, %s145
      %p157 = scmp.eq.s32.totalorder %s23, 1
      %p158 = por %p156, %p157
      %p160 = scmp.ne.s32.totalorder %s145, %s159
      %p161 = scmp.eq.s32.totalorder %s23, 0
      %p162 = por %p160, %p161
      %s164 = sadd.s32 %s163, 1
      %p167 = scmp.eq.s32.totalorder %s17, 1
      %p168 = scmp.ne.s32.totalorder %s163, %s165
      %p169 = scmp.eq.s32.totalorder %s17, 0
      %p170 = por %p168, %p169
      %p171 = scmp.ne.s32.totalorder %s163, %s165
      %p172 = scmp.eq.s32.totalorder %s22, 1
      %p173 = por %p171, %p172
      %p174 = scmp.ne.s32.totalorder %s165, %s166
      %p175 = scmp.eq.s32.totalorder %s22, 0
      %p176 = por %p174, %p175
      %p177 = scmp.ne.s32.totalorder %s165, %s166
      %p178 = scmp.eq.s32.totalorder %s23, 1
      %p179 = por %p177, %p178
      %p181 = scmp.ne.s32.totalorder %s166, %s180
      %p182 = scmp.eq.s32.totalorder %s23, 0
      %p183 = por %p181, %p182
      %s185 = sadd.s32 %s184, 1
      %p188 = scmp.eq.s32.totalorder %s17, 1
      %p189 = scmp.ne.s32.totalorder %s184, %s186
      %p190 = scmp.eq.s32.totalorder %s17, 0
      %p191 = por %p189, %p190
      %p192 = scmp.ne.s32.totalorder %s184, %s186
      %p193 = scmp.eq.s32.totalorder %s22, 1
      %p194 = por %p192, %p193
      %p195 = scmp.ne.s32.totalorder %s186, %s187
      %p196 = scmp.eq.s32.totalorder %s22, 0
      %p197 = por %p195, %p196
      %p198 = scmp.ne.s32.totalorder %s186, %s187
      %p199 = scmp.eq.s32.totalorder %s23, 1
      %p200 = por %p198, %p199
      %p202 = scmp.ne.s32.totalorder %s187, %s201
      %p203 = scmp.eq.s32.totalorder %s23, 0
      %p204 = por %p202, %p203
      %s206 = sadd.s32 %s205, 1
      %p209 = scmp.eq.s32.totalorder %s17, 1
      %p210 = scmp.ne.s32.totalorder %s205, %s207
      %p211 = scmp.eq.s32.totalorder %s17, 0
      %p212 = por %p210, %p211
      %p213 = scmp.ne.s32.totalorder %s205, %s207
      %p214 = scmp.eq.s32.totalorder %s22, 1
      %p215 = por %p213, %p214
      %p216 = scmp.ne.s32.totalorder %s207, %s208
      %p217 = scmp.eq.s32.totalorder %s22, 0
      %p218 = por %p216, %p217
      %p219 = scmp.ne.s32.totalorder %s207, %s208
      %p220 = scmp.eq.s32.totalorder %s23, 1
      %p221 = por %p219, %p220
      %p223 = scmp.ne.s32.totalorder %s208, %s222
      %p224 = scmp.eq.s32.totalorder %s23, 0
      %p225 = por %p223, %p224
      %s226 = sadd.s32 %s25, %s26
      %s227 = sadd.s32 %s39, %s35
      %s228 = ssub.s32 %s24, %s43
      %s229 = ssub.s32 %s226, %s227
      %s230 = sor.u32 %s228, %s229
      %p231 = scmp.eq.s32.totalorder %s230, 0
      %s233 = sadd.s32 %s232, 1
      %s234 = scalar_select %p231, %s232, %s233
      %p237 = pneg %p231
      %p238 = scmp.eq.s32.totalorder %s17, 1
      %p239 = por %p237, %p238
      %p240 = scmp.ne.s32.totalorder %s232, %s235
      %p241 = scmp.eq.s32.totalorder %s17, 0
      %p242 = por %p240, %p241
      %p243 = scmp.ne.s32.totalorder %s232, %s235
      %p244 = scmp.eq.s32.totalorder %s22, 1
      %p245 = por %p243, %p244
      %p246 = scmp.ne.s32.totalorder %s235, %s236
      %p247 = scmp.eq.s32.totalorder %s22, 0
      %p248 = por %p246, %p247
      %p249 = scmp.ne.s32.totalorder %s235, %s236
      %p250 = scmp.eq.s32.totalorder %s23, 1
      %p251 = por %p249, %p250
      %p253 = scmp.ne.s32.totalorder %s236, %s252
      %p254 = scmp.eq.s32.totalorder %s23, 0
      %p255 = por %p253, %p254
      %p256 = scmp.le.s32.totalorder 1, %s17
      %p257 = scmp.lt.s32.totalorder %s17, 3
      %p258 = pnand %p256, %p257
      %p259 = pneg %p258
      // Predicated region
      $region9: #{tpu_custom_call.1} parent=5 // pred_check
        _
      $region10: #{tpu_custom_call.1} parent=5 // pred_check_branch
        %261 = sbr.rel (%p258) target = $region12
      $region11: #{tpu_custom_call.1} parent=5 // pred_region
        %s262 = ssub.s32 %s17, 1
        // Predicated region
        $region13: #{tpu_custom_call.1} parent=11 // pred_check
          %p263 = pneg %p113
        $region14: #{tpu_custom_call.1} parent=11 // pred_check_branch
          %265 = sbr.rel (%p263) target = $region16
        $region15: #{tpu_custom_call.1} parent=11 // pred_region
          _
        $region16: #{tpu_custom_call.1} parent=11 // pred_fallthru
          _
        // Predicated region
        $region17: #{tpu_custom_call.1} parent=11 // pred_check
          %p266 = pneg %p134
        $region18: #{tpu_custom_call.1} parent=11 // pred_check_branch
          %268 = sbr.rel (%p266) target = $region20
        $region19: #{tpu_custom_call.1} parent=11 // pred_region
          _
        $region20: #{tpu_custom_call.1} parent=11 // pred_fallthru
          _
        // Predicated region
        $region21: #{tpu_custom_call.1} parent=11 // pred_check
          %p269 = pneg %p155
        $region22: #{tpu_custom_call.1} parent=11 // pred_check_branch
          %271 = sbr.rel (%p269) target = $region24
        $region23: #{tpu_custom_call.1} parent=11 // pred_region
          _
        $region24: #{tpu_custom_call.1} parent=11 // pred_fallthru
          _
        // Predicated region
        $region25: #{tpu_custom_call.1} parent=11 // pred_check
          %p272 = pneg %p176
        $region26: #{tpu_custom_call.1} parent=11 // pred_check_branch
          %274 = sbr.rel (%p272) target = $region28
        $region27: #{tpu_custom_call.1} parent=11 // pred_region
          _
        $region28: #{tpu_custom_call.1} parent=11 // pred_fallthru
          _
        // Predicated region
        $region29: #{tpu_custom_call.1} parent=11 // pred_check
          %p275 = pneg %p197
        $region30: #{tpu_custom_call.1} parent=11 // pred_check_branch
          %277 = sbr.rel (%p275) target = $region32
        $region31: #{tpu_custom_call.1} parent=11 // pred_region
          _
        $region32: #{tpu_custom_call.1} parent=11 // pred_fallthru
          _
        // Predicated region
        $region33: #{tpu_custom_call.1} parent=11 // pred_check
          %p278 = pneg %p218
        $region34: #{tpu_custom_call.1} parent=11 // pred_check_branch
          %280 = sbr.rel (%p278) target = $region36
        $region35: #{tpu_custom_call.1} parent=11 // pred_region
          _
        $region36: #{tpu_custom_call.1} parent=11 // pred_fallthru
          _
      $region12: #{tpu_custom_call.1} parent=5 // pred_fallthru
        _
      %p281 = scmp.lt.s32.totalorder %s17, 2
      // Predicated region
      $region37: #{tpu_custom_call.1} parent=5 // pred_check
        %p282 = pneg %p281
      $region38: #{tpu_custom_call.1} parent=5 // pred_check_branch
        %284 = sbr.rel (%p282) target = $region40
      $region39: #{tpu_custom_call.1} parent=5 // pred_region
        // Predicated region
        $region41: #{tpu_custom_call.1} parent=39 // pred_check
          %p285 = pneg %p60
        $region42: #{tpu_custom_call.1} parent=39 // pred_check_branch
          %287 = sbr.rel (%p285) target = $region44
        $region43: #{tpu_custom_call.1} parent=39 // pred_region
          %s288 = sadd.s32 %s25, %s26
          %p289 = scmp.lt.s32.totalorder %s24, 1
          %s290 = scalar_select %p289, %s24, 1
          %p291 = scmp.lt.s32.totalorder %s288, 0
          %s292 = scalar_select %p291, %s288, 0
          %s293 = sadd.s32 %s292, %s290
          %s294 = smul.addr %s293, 4
          %s295 = scalar_lea.vmem %s0, %s294
          %s296 = sadd.s32 %s25, %s26
        $region44: #{tpu_custom_call.1} parent=39 // pred_fallthru
          _
        // Predicated region
        $region45: #{tpu_custom_call.1} parent=39 // pred_check
          %p297 = pneg %p86
        $region46: #{tpu_custom_call.1} parent=39 // pred_check_branch
          %299 = sbr.rel (%p297) target = $region48
        $region47: #{tpu_custom_call.1} parent=39 // pred_region
          %p300 = scmp.lt.s32.totalorder %s24, 1
          %s301 = scalar_select %p300, %s24, 1
          %s302 = smul.addr %s301, 8
          %s303 = scalar_lea.vmem %s1, %s302
        $region48: #{tpu_custom_call.1} parent=39 // pred_fallthru
          _
      $region40: #{tpu_custom_call.1} parent=5 // pred_fallthru
        _
      %p304 = scmp.le.s32.totalorder 1, %s17
      %p305 = scmp.lt.s32.totalorder %s17, 3
      %p306 = pnand %p304, %p305
      %p307 = pneg %p306
      // Predicated region
      $region49: #{tpu_custom_call.1} parent=5 // pred_check
        _
      $region50: #{tpu_custom_call.1} parent=5 // pred_check_branch
        %309 = sbr.rel (%p306) target = $region52
      $region51: #{tpu_custom_call.1} parent=5 // pred_region
        %s310 = ssub.s32 %s17, 1
        %s311 = sadd.s32 %s28, %s29
        %p312 = scmp.lt.s32.totalorder %s27, 1
        %s313 = scalar_select %p312, %s27, 1
        %p314 = scmp.lt.s32.totalorder %s311, 0
        %s315 = scalar_select %p314, %s311, 0
        %s316 = sadd.s32 %s315, %s313
        %s317 = smul.addr %s316, 4
        %s318 = scalar_lea.vmem %s0, %s317
        %p319 = pneg %p66
        %p320 = pneg %p63
        %p321 = scmp.lt.s32.totalorder %s27, 1
        %s322 = scalar_select %p321, %s27, 1
        %s323 = smul.addr %s322, 8
        %s324 = scalar_lea.vmem %s1, %s323
        %p325 = pneg %p92
        %p326 = pneg %p89
        %p327 = pneg %p113
        %p328 = pneg %p110
        %p329 = pneg %p134
        %p330 = pneg %p131
        %p331 = pneg %p155
        %p332 = pneg %p152
        %p333 = pneg %p176
        %p334 = pneg %p173
        %p335 = pneg %p197
        %p336 = pneg %p194
        %p337 = pneg %p218
        %p338 = pneg %p215
        %p339 = pneg %p248
        %p340 = pneg %p245
        %s341 = sand.u32 %s235, 1
        %s342 = scalar_lea.sflag [#allocation5], %s341
        %s343 = sand.u32 %s235, 1
        %s344 = smul.addr %s343, 4
        %s345 = scalar_lea.vmem [#allocation4], %s344
        %s346 = sadd.s32 %s28, %s29
        %p347 = scmp.lt.s32.totalorder %s27, 1
        %s348 = scalar_select %p347, %s27, 1
        %p349 = scmp.lt.s32.totalorder %s346, 0
        %s350 = scalar_select %p349, %s346, 0
        %s351 = sadd.s32 %s350, %s348
        %s352 = smul.addr %s351, 4
        %s353 = scalar_lea.vmem %s0, %s352
        %s354 = sadd.s32 %s28, %s29
        %p355 = scmp.lt.s32.totalorder %s27, 1
        %s356 = scalar_select %p355, %s27, 1
        %s357 = smul.addr %s356, 8
        %s358 = scalar_lea.vmem %s1, %s357
        %s359 = sadd.s32 %s28, %s29
        %p361 = scmp.eq.s32.totalorder %s29, 0
        // Predicated region
        $region53: #{tpu_custom_call.1} parent=51 // pred_check
          %p362 = pneg %p361
        $region54: #{tpu_custom_call.1} parent=51 // pred_check_branch
          %364 = sbr.rel (%p362) target = $region56
        $region55: #{tpu_custom_call.1} parent=51 // pred_region
          %v365 = vld [vmem:[%s358] sm:$0xff]
          %v366 = vpack.c.bf16 %v365, %v365
          %v367 = vld [vmem:[%s4] sm:$0xf]
          %v368 = vld [vmem:[%s4 + $0x4] sm:$0xf]
          %v369 = vld [vmem:[%s4 + $0x8] sm:$0xf]
          %v370 = vld [vmem:[%s4 + $0xc] sm:$0xf]
          %v371 = vld [vmem:[%s4 + $0x10] sm:$0xf]
          %v372 = vld [vmem:[%s4 + $0x14] sm:$0xf]
          %v373 = vld [vmem:[%s4 + $0x18] sm:$0xf]
          %v374 = vld [vmem:[%s4 + $0x1c] sm:$0xf]
          %v375 = vld [vmem:[%s5] sm:$0xff]
          %v376 = vld [vmem:[%s5 + $0x8] sm:$0xff]
          %v377 = vld [vmem:[%s5 + $0x10] sm:$0xff]
          %v378 = vld [vmem:[%s5 + $0x18] sm:$0xff]
          %v379 = vld [vmem:[%s5 + $0x20] sm:$0xff]
          %v380 = vld [vmem:[%s5 + $0x28] sm:$0xff]
          %v381 = vld [vmem:[%s5 + $0x30] sm:$0xff]
          %v382 = vld [vmem:[%s5 + $0x38] sm:$0xff]
          %384 = vset.pattern.permute.xlu0 0
          %385 = vperm.xlu0 %384, %v375
          %v386 = vpop.permute.xlu0 %385
          %389 = vset.pattern.permute.xlu0 0
          %390 = vperm.xlu0 %389, %v376
          %v391 = vpop.permute.xlu0 %390
          %394 = vset.pattern.permute.xlu0 0
          %395 = vperm.xlu0 %394, %v377
          %v396 = vpop.permute.xlu0 %395
          %399 = vset.pattern.permute.xlu0 0
          %400 = vperm.xlu0 %399, %v378
          %v401 = vpop.permute.xlu0 %400
          %404 = vset.pattern.permute.xlu0 0
          %405 = vperm.xlu0 %404, %v379
          %v406 = vpop.permute.xlu0 %405
          %409 = vset.pattern.permute.xlu0 0
          %410 = vperm.xlu0 %409, %v380
          %v411 = vpop.permute.xlu0 %410
          %414 = vset.pattern.permute.xlu0 0
          %415 = vperm.xlu0 %414, %v381
          %v416 = vpop.permute.xlu0 %415
          %419 = vset.pattern.permute.xlu0 0
          %420 = vperm.xlu0 %419, %v382
          %v421 = vpop.permute.xlu0 %420
          %v431 = vunpack.c.l.b16 %v367
          %v432 = vunpack.c.l.b16 %v368
          %v433 = vunpack.c.l.b16 %v369
          %v434 = vunpack.c.l.b16 %v370
          %v435 = vunpack.c.l.b16 %v371
          %v436 = vunpack.c.l.b16 %v372
          %v437 = vunpack.c.l.b16 %v373
          %v438 = vunpack.c.l.b16 %v374
          %v439 = vpack.c.b16 %v432, %v431
          %v440 = vpack.c.b16 %v434, %v433
          %v441 = vpack.c.b16 %v436, %v435
          %v442 = vpack.c.b16 %v438, %v437
          %vm443 = vcmask 64512
          %v445 = vsel %vm443, %v439, 0
          %v448 = vsel %vm443, %v440, 0
          %v451 = vsel %vm443, %v441, 0
          %v454 = vsel %vm443, %v442, 0
          %vm456 = vcmask 1043456
          %v458 = vsel %vm456, %v366, 0
          %460 = vmatprep.subr.bf16.mxu0 0
          %461 = vmatpush1.bf16.msra.mxu0 0
          %462 = vmatprep.subr.bf16.mxu0 0
          %463 = vmatpush1.bf16.msra.mxu0 0
          %464 = vmatprep.subr.bf16.mxu0 0
          %465 = vmatpush1.bf16.msra.mxu0 0
          %466 = vmatprep.subr.bf16.mxu0 0
          %467 = vmatpush1.bf16.msra.mxu0 0
          %468 = vmatprep.subr.bf16.mxu0 0
          %469 = vmatpush1.bf16.msra.mxu0 0
          %470 = vmatprep.subr.bf16.mxu0 0
          %471 = vmatpush1.bf16.msra.mxu0 0
          %472 = vmatprep.subr.bf16.mxu0 0
          %473 = vmatpush1.bf16.msra.mxu0 0
          %474 = vmatprep.subr.bf16.mxu0 0
          %475 = vmatpush1.bf16.msra.mxu0 %v458
          %476 = vmatprep.subr.bf16.mxu0 0
          %477 = vmatpush2.bf16.msra.mxu0 0
          %478 = vmatprep.subr.bf16.mxu0 0
          %479 = vmatpush2.bf16.msra.mxu0 0
          %480 = vmatprep.subr.bf16.mxu0 0
          %481 = vmatpush2.bf16.msra.mxu0 0
          %482 = vmatprep.subr.bf16.mxu0 0
          %483 = vmatpush2.bf16.msra.mxu0 0
          %484 = vmatprep.subr.bf16.mxu0 0
          %485 = vmatpush2.bf16.msra.mxu0 0
          %486 = vmatprep.subr.bf16.mxu0 0
          %487 = vmatpush2.bf16.msra.mxu0 0
          %488 = vmatprep.subr.bf16.mxu0 0
          %489 = vmatpush2.bf16.msra.mxu0 0
          %490 = vmatprep.subr.bf16.mxu0 0
          %491 = vmatpush2.bf16.msra.mxu0 0
          %492 = vmatprep.mubr.bf16.mxu0 0
          %493 = vmatmul.mubr.bf16.gmra.mxu0 %v445
          %v494 = vpop.f32.mrf.mxu0
          %v495 = vadd.f32 %v386, %v494
          %v496 = vpop.f32.mrf.mxu0
          %v497 = vpop.f32.mrf.mxu0
          %v498 = vadd.f32 %v391, %v497
          %v499 = vpop.f32.mrf.mxu0
          %500 = vmatprep.mubr.bf16.mxu0 0
          %501 = vmatmul.mubr.bf16.gmra.mxu0 %v448
          %v502 = vpop.f32.mrf.mxu0
          %v503 = vadd.f32 %v396, %v502
          %v504 = vpop.f32.mrf.mxu0
          %v505 = vpop.f32.mrf.mxu0
          %v506 = vadd.f32 %v401, %v505
          %v507 = vpop.f32.mrf.mxu0
          %508 = vmatprep.mubr.bf16.mxu0 0
          %509 = vmatmul.mubr.bf16.gmra.mxu0 %v451
          %v510 = vpop.f32.mrf.mxu0
          %v511 = vadd.f32 %v406, %v510
          %v512 = vpop.f32.mrf.mxu0
          %v513 = vpop.f32.mrf.mxu0
          %v514 = vadd.f32 %v411, %v513
          %v515 = vpop.f32.mrf.mxu0
          %516 = vmatprep.mubr.bf16.mxu0 0
          %517 = vmatmul.mubr.bf16.gmra.mxu0 %v454
          %v518 = vpop.f32.mrf.mxu0
          %v519 = vadd.f32 %v416, %v518
          %v520 = vpop.f32.mrf.mxu0
          %v521 = vpop.f32.mrf.mxu0
          %v522 = vadd.f32 %v421, %v521
          %v523 = vpop.f32.mrf.mxu0
          %524 = vdwg.mxu0
          %525 = vxpose.xlu0.b32.start [1/16] %v495, 128
          %526 = vxpose.xlu0.b32.cont [2/16] %v498, 128
          %527 = vxpose.xlu0.b32.cont [3/16] %v503, 128
          %528 = vxpose.xlu0.b32.cont [4/16] %v506, 128
          %529 = vxpose.xlu0.b32.cont [5/16] 0.0, 128
          %530 = vxpose.xlu0.b32.cont [6/16] 0.0, 128
          %531 = vxpose.xlu0.b32.cont [7/16] 0.0, 128
          %532 = vxpose.xlu0.b32.cont [8/16] 0.0, 128
          %533 = vxpose.xlu0.b32.cont [9/16] 0.0, 128
          %534 = vxpose.xlu0.b32.cont [10/16] 0.0, 128
          %535 = vxpose.xlu0.b32.cont [11/16] 0.0, 128
          %536 = vxpose.xlu0.b32.cont [12/16] 0.0, 128
          %537 = vxpose.xlu0.b32.cont [13/16] 0.0, 128
          %538 = vxpose.xlu0.b32.cont [14/16] 0.0, 128
          %539 = vxpose.xlu0.b32.cont [15/16] 0.0, 128
          %540 = vxpose.xlu0.b32.end [16/16] 0.0, 128
          %v541 = vpop.trf.xlu0
          %v542 = vpop.trf.xlu0
          %v543 = vpop.trf.xlu0
          %v544 = vpop.trf.xlu0
          %v545 = vpop.trf.xlu0
          %v546 = vpop.trf.xlu0
          %v547 = vpop.trf.xlu0
          %v548 = vpop.trf.xlu0
          %v549 = vpop.trf.xlu0
          %v550 = vpop.trf.xlu0
          %v551 = vpop.trf.xlu0
          %v552 = vpop.trf.xlu0
          %v553 = vpop.trf.xlu0
          %v554 = vpop.trf.xlu0
          %v555 = vpop.trf.xlu0
          %v556 = vpop.trf.xlu0
          %v557 = vpack.c.bf16 %v541, %v541
          %vm558 = vcmask 257024
          %559 = vst.msk [vmem:[#allocation2] sm:$0xf] %vm558, %v557
          %v560 = vpack.c.bf16 %v514, %v511
          %v561 = vpack.c.bf16 %v522, %v519
          %v564 = vunpack.c.l.b16 %v560
          %v565 = vunpack.c.h.b16 %v560
          %v566 = vunpack.c.l.b16 %v561
          %v567 = vunpack.c.h.b16 %v561
          %v568 = vpack.c.b16 %v564, %v564
          %v569 = vpack.c.b16 %v565, %v565
          %v570 = vpack.c.b16 %v566, %v566
          %v571 = vpack.c.b16 %v567, %v567
          %vm576 = vcmask 60416
          %577 = vst.msk [vmem:[#allocation3] sm:$0xf] %vm576, %v568
          %578 = vst.msk [vmem:[#allocation3 + $0x4] sm:$0xf] %vm576, %v569
          %579 = vst.msk [vmem:[#allocation3 + $0x8] sm:$0xf] %vm576, %v570
          %580 = vst.msk [vmem:[#allocation3 + $0xc] sm:$0xf] %vm576, %v571
        $region56: #{tpu_custom_call.1} parent=51 // pred_fallthru
          _
        %v581 = vld [vmem:[%s353] sm:$0xf]
        %v582 = vpack.c.bf16 %v581, %v581
        %v583 = vld [vmem:[%s2] sm:$0xf]
        %v584 = vld [vmem:[%s2 + $0x4] sm:$0xf]
        %v585 = vld [vmem:[%s2 + $0x8] sm:$0xf]
        %v586 = vld [vmem:[%s2 + $0xc] sm:$0xf]
        %v587 = vld [vmem:[%s3] sm:$0xff]
        %v588 = vld [vmem:[%s3 + $0x8] sm:$0xff]
        %v589 = vld [vmem:[%s3 + $0x10] sm:$0xff]
        %v590 = vld [vmem:[%s3 + $0x18] sm:$0xff]
        %592 = vset.pattern.permute.xlu0 0
        %593 = vperm.xlu0 %592, %v587
        %v594 = vpop.permute.xlu0 %593
        %597 = vset.pattern.permute.xlu0 0
        %598 = vperm.xlu0 %597, %v588
        %v599 = vpop.permute.xlu0 %598
        %602 = vset.pattern.permute.xlu0 0
        %603 = vperm.xlu0 %602, %v589
        %v604 = vpop.permute.xlu0 %603
        %607 = vset.pattern.permute.xlu0 0
        %608 = vperm.xlu0 %607, %v590
        %v609 = vpop.permute.xlu0 %608
        %v615 = vunpack.c.l.b16 %v583
        %v616 = vunpack.c.l.b16 %v584
        %v617 = vunpack.c.l.b16 %v585
        %v618 = vunpack.c.l.b16 %v586
        %v619 = vpack.c.b16 %v616, %v615
        %v620 = vpack.c.b16 %v618, %v617
        %vm621 = vcmask 31744
        %v623 = vsel %vm621, %v619, 0
        %v626 = vsel %vm621, %v620, 0
        %vm628 = vcmask 1041408
        %v630 = vsel %vm628, %v582, 0
        %632 = vmatprep.subr.bf16.mxu0 0
        %633 = vmatpush1.bf16.msra.mxu0 0
        %634 = vmatprep.subr.bf16.mxu0 0
        %635 = vmatpush1.bf16.msra.mxu0 0
        %636 = vmatprep.subr.bf16.mxu0 0
        %637 = vmatpush1.bf16.msra.mxu0 0
        %638 = vmatprep.subr.bf16.mxu0 0
        %639 = vmatpush1.bf16.msra.mxu0 0
        %640 = vmatprep.subr.bf16.mxu0 0
        %641 = vmatpush1.bf16.msra.mxu0 0
        %642 = vmatprep.subr.bf16.mxu0 0
        %643 = vmatpush1.bf16.msra.mxu0 0
        %644 = vmatprep.subr.bf16.mxu0 0
        %645 = vmatpush1.bf16.msra.mxu0 0
        %646 = vmatprep.subr.bf16.mxu0 0
        %647 = vmatpush1.bf16.msra.mxu0 %v630
        %648 = vmatprep.subr.bf16.mxu0 0
        %649 = vmatpush2.bf16.msra.mxu0 0
        %650 = vmatprep.subr.bf16.mxu0 0
        %651 = vmatpush2.bf16.msra.mxu0 0
        %652 = vmatprep.subr.bf16.mxu0 0
        %653 = vmatpush2.bf16.msra.mxu0 0
        %654 = vmatprep.subr.bf16.mxu0 0
        %655 = vmatpush2.bf16.msra.mxu0 0
        %656 = vmatprep.subr.bf16.mxu0 0
        %657 = vmatpush2.bf16.msra.mxu0 0
        %658 = vmatprep.subr.bf16.mxu0 0
        %659 = vmatpush2.bf16.msra.mxu0 0
        %660 = vmatprep.subr.bf16.mxu0 0
        %661 = vmatpush2.bf16.msra.mxu0 0
        %662 = vmatprep.subr.bf16.mxu0 0
        %663 = vmatpush2.bf16.msra.mxu0 0
        %664 = vmatprep.mubr.bf16.mxu0 0
        %665 = vmatmul.mubr.bf16.gmra.mxu0 %v623
        %v666 = vpop.f32.mrf.mxu0
        %v667 = vadd.f32 %v594, %v666
        %v668 = vpop.f32.mrf.mxu0
        %v669 = vpop.f32.mrf.mxu0
        %v670 = vadd.f32 %v599, %v669
        %v671 = vpop.f32.mrf.mxu0
        %672 = vmatprep.mubr.bf16.mxu0 0
        %673 = vmatmul.mubr.bf16.gmra.mxu0 %v626
        %v674 = vpop.f32.mrf.mxu0
        %v675 = vadd.f32 %v604, %v674
        %v676 = vpop.f32.mrf.mxu0
        %v677 = vpop.f32.mrf.mxu0
        %v678 = vadd.f32 %v609, %v677
        %v679 = vpop.f32.mrf.mxu0
        %680 = vdwg.mxu0
        %v681 = vpack.c.bf16 %v670, %v667
        %v682 = vpack.c.bf16 %v678, %v675
        %v683 = vld [vmem:[#allocation2] sm:$0xf]
        %vm684 = vcmask 261120
        %v686 = vsel %vm684, %v683, 0
        %688 = vmatprep.subr.bf16.mxu0 0
        %689 = vmatpush1.bf16.msra.mxu0 0
        %690 = vmatprep.subr.bf16.mxu0 0
        %691 = vmatpush1.bf16.msra.mxu0 0
        %692 = vmatprep.subr.bf16.mxu0 0
        %693 = vmatpush1.bf16.msra.mxu0 0
        %694 = vmatprep.subr.bf16.mxu0 0
        %695 = vmatpush1.bf16.msra.mxu0 0
        %696 = vmatprep.subr.bf16.mxu0 0
        %697 = vmatpush1.bf16.msra.mxu0 0
        %698 = vmatprep.subr.bf16.mxu0 0
        %699 = vmatpush1.bf16.msra.mxu0 0
        %700 = vmatprep.subr.bf16.mxu0 0
        %701 = vmatpush1.bf16.msra.mxu0 %v682
        %702 = vmatprep.subr.bf16.mxu0 0
        %703 = vmatpush1.bf16.msra.mxu0 %v681
        %704 = vmatprep.subr.bf16.mxu0 0
        %705 = vmatpush2.bf16.msra.mxu0 0
        %706 = vmatprep.subr.bf16.mxu0 0
        %707 = vmatpush2.bf16.msra.mxu0 0
        %708 = vmatprep.subr.bf16.mxu0 0
        %709 = vmatpush2.bf16.msra.mxu0 0
        %710 = vmatprep.subr.bf16.mxu0 0
        %711 = vmatpush2.bf16.msra.mxu0 0
        %712 = vmatprep.subr.bf16.mxu0 0
        %713 = vmatpush2.bf16.msra.mxu0 0
        %714 = vmatprep.subr.bf16.mxu0 0
        %715 = vmatpush2.bf16.msra.mxu0 0
        %716 = vmatprep.subr.bf16.mxu0 0
        %717 = vmatpush2.bf16.msra.mxu0 0
        %718 = vmatprep.subr.bf16.mxu0 0
        %719 = vmatpush2.bf16.msra.mxu0 0
        %720 = vmatprep.mubr.bf16.mxu0 0
        %721 = vmatmul.mubr.bf16.gmra.mxu0 %v686
        %v722 = vpop.f32.mrf.mxu0
        %v723 = vadd.f32 0.0, %v722
        %v724 = vpop.f32.mrf.mxu0
        %v725 = vpop.f32.mrf.mxu0
        %v726 = vpop.f32.mrf.mxu0
        %727 = vdwg.mxu0
        %v728 = vrot.slane %v723, 4
        %v729 = vmax.f32 %v723, %v728
        %v730 = vrot.slane %v729, 2
        %v731 = vmax.f32 %v729, %v730
        %v732 = vrot.slane %v731, 1
        %v733 = vmax.f32 %v731, %v732
        %v734 = vsub.f32 %v723, %v733
        %v735 = vmul.f32 %v734, 1.442695
        %v736 = vpow.pop %v735
        %v737 = vrot.slane %v736, 4
        %v738 = vadd.f32 %v736, %v737
        %v739 = vrot.slane %v738, 2
        %v740 = vadd.f32 %v738, %v739
        %v741 = vrot.slane %v740, 1
        %v742 = vadd.f32 %v740, %v741
        %v743 = vld [vmem:[#allocation3] sm:$0xf]
        %v744 = vld [vmem:[#allocation3 + $0x4] sm:$0xf]
        %v745 = vld [vmem:[#allocation3 + $0x8] sm:$0xf]
        %v746 = vld [vmem:[#allocation3 + $0xc] sm:$0xf]
        %v747 = vpack.c.bf16 %v736, %v736
        %v752 = vunpack.c.l.b16 %v743
        %v753 = vunpack.c.l.b16 %v744
        %v754 = vunpack.c.l.b16 %v745
        %v755 = vunpack.c.l.b16 %v746
        %v756 = vpack.c.b16 %v753, %v752
        %v757 = vpack.c.b16 %v755, %v754
        %vm758 = vcmask 64512
        %v760 = vsel %vm758, %v756, 0
        %v763 = vsel %vm758, %v757, 0
        %vm765 = vcmask 1043456
        %v767 = vsel %vm765, %v747, 0
        %769 = vmatprep.subr.bf16.mxu0 0
        %770 = vmatpush1.bf16.msra.mxu0 0
        %771 = vmatprep.subr.bf16.mxu0 0
        %772 = vmatpush1.bf16.msra.mxu0 0
        %773 = vmatprep.subr.bf16.mxu0 0
        %774 = vmatpush1.bf16.msra.mxu0 0
        %775 = vmatprep.subr.bf16.mxu0 0
        %776 = vmatpush1.bf16.msra.mxu0 0
        %777 = vmatprep.subr.bf16.mxu0 0
        %778 = vmatpush1.bf16.msra.mxu0 0
        %779 = vmatprep.subr.bf16.mxu0 0
        %780 = vmatpush1.bf16.msra.mxu0 0
        %781 = vmatprep.subr.bf16.mxu0 0
        %782 = vmatpush1.bf16.msra.mxu0 0
        %783 = vmatprep.subr.bf16.mxu0 0
        %784 = vmatpush1.bf16.msra.mxu0 %v767
        %785 = vmatprep.subr.bf16.mxu0 0
        %786 = vmatpush2.bf16.msra.mxu0 0
        %787 = vmatprep.subr.bf16.mxu0 0
        %788 = vmatpush2.bf16.msra.mxu0 0
        %789 = vmatprep.subr.bf16.mxu0 0
        %790 = vmatpush2.bf16.msra.mxu0 0
        %791 = vmatprep.subr.bf16.mxu0 0
        %792 = vmatpush2.bf16.msra.mxu0 0
        %793 = vmatprep.subr.bf16.mxu0 0
        %794 = vmatpush2.bf16.msra.mxu0 0
        %795 = vmatprep.subr.bf16.mxu0 0
        %796 = vmatpush2.bf16.msra.mxu0 0
        %797 = vmatprep.subr.bf16.mxu0 0
        %798 = vmatpush2.bf16.msra.mxu0 0
        %799 = vmatprep.subr.bf16.mxu0 0
        %800 = vmatpush2.bf16.msra.mxu0 0
        %801 = vmatprep.mubr.bf16.mxu0 0
        %802 = vmatmul.mubr.bf16.gmra.mxu0 %v760
        %v803 = vpop.f32.mrf.mxu0
        %v804 = vadd.f32 0.0, %v803
        %v805 = vpop.f32.mrf.mxu0
        %v806 = vpop.f32.mrf.mxu0
        %v807 = vadd.f32 0.0, %v806
        %v808 = vpop.f32.mrf.mxu0
        %809 = vmatprep.mubr.bf16.mxu0 0
        %810 = vmatmul.mubr.bf16.gmra.mxu0 %v763
        %v811 = vpop.f32.mrf.mxu0
        %v812 = vadd.f32 0.0, %v811
        %v813 = vpop.f32.mrf.mxu0
        %v814 = vpop.f32.mrf.mxu0
        %v815 = vadd.f32 0.0, %v814
        %v816 = vpop.f32.mrf.mxu0
        %817 = vdwg.mxu0
        %v818 = vrcp.pop %v742
        %v819 = vmul.f32 %v804, %v818
        %v820 = vmul.f32 %v807, %v818
        %v821 = vmul.f32 %v812, %v818
        %v822 = vmul.f32 %v815, %v818
        %v823 = vld [vmem:[%s6] sm:$0x3]
        %v824 = vpack.c.bf16 %v820, %v819
        %v825 = vpack.c.bf16 %v822, %v821
        %v826 = vld [vmem:[%s7] sm:$0xf]
        %828 = vset.pattern.permute.xlu0 0
        %829 = vperm.xlu0 %828, %v826
        %v830 = vpop.permute.xlu0 %829
        %v833 = vsel %vm684, %v823, 0
        %835 = vmatprep.subr.bf16.mxu0 0
        %836 = vmatpush1.bf16.msra.mxu0 0
        %837 = vmatprep.subr.bf16.mxu0 0
        %838 = vmatpush1.bf16.msra.mxu0 0
        %839 = vmatprep.subr.bf16.mxu0 0
        %840 = vmatpush1.bf16.msra.mxu0 0
        %841 = vmatprep.subr.bf16.mxu0 0
        %842 = vmatpush1.bf16.msra.mxu0 0
        %843 = vmatprep.subr.bf16.mxu0 0
        %844 = vmatpush1.bf16.msra.mxu0 0
        %845 = vmatprep.subr.bf16.mxu0 0
        %846 = vmatpush1.bf16.msra.mxu0 0
        %847 = vmatprep.subr.bf16.mxu0 0
        %848 = vmatpush1.bf16.msra.mxu0 %v825
        %849 = vmatprep.subr.bf16.mxu0 0
        %850 = vmatpush1.bf16.msra.mxu0 %v824
        %851 = vmatprep.subr.bf16.mxu0 0
        %852 = vmatpush2.bf16.msra.mxu0 0
        %853 = vmatprep.subr.bf16.mxu0 0
        %854 = vmatpush2.bf16.msra.mxu0 0
        %855 = vmatprep.subr.bf16.mxu0 0
        %856 = vmatpush2.bf16.msra.mxu0 0
        %857 = vmatprep.subr.bf16.mxu0 0
        %858 = vmatpush2.bf16.msra.mxu0 0
        %859 = vmatprep.subr.bf16.mxu0 0
        %860 = vmatpush2.bf16.msra.mxu0 0
        %861 = vmatprep.subr.bf16.mxu0 0
        %862 = vmatpush2.bf16.msra.mxu0 0
        %863 = vmatprep.subr.bf16.mxu0 0
        %864 = vmatpush2.bf16.msra.mxu0 0
        %865 = vmatprep.subr.bf16.mxu0 0
        %866 = vmatpush2.bf16.msra.mxu0 0
        %867 = vmatprep.mubr.bf16.mxu0 0
        %868 = vmatmul.mubr.bf16.gmra.mxu0 %v833
        %v869 = vpop.f32.mrf.mxu0
        %v870 = vadd.f32 %v830, %v869
        %v871 = vpop.f32.mrf.mxu0
        %v872 = vpop.f32.mrf.mxu0
        %v873 = vpop.f32.mrf.mxu0
        %874 = vdwg.mxu0
        %v875 = vadd.f32 %v870, %v581
        %876 = vst [vmem:[%s345] sm:$0xf] %v875
        %s877 = sand.u32 %s235, 1
        %s878 = scalar_lea.sflag [#allocation5], %s877
        %s879 = sand.u32 %s235, 1
        %s880 = smul.addr %s879, 4
        %s881 = scalar_lea.vmem [#allocation4], %s880
        // Predicated region
        $region57: #{tpu_custom_call.1} parent=51 // pred_check
          %p882 = pneg %p245
        $region58: #{tpu_custom_call.1} parent=51 // pred_check_branch
          %884 = sbr.rel (%p882) target = $region60
        $region59: #{tpu_custom_call.1} parent=51 // pred_region
          %s885 = sadd.s32 %s28, %s29
          %s887 = ssub.s32 64, 64
          %888 = vsyncadd %s878, %s887
          %s889 = sadd.s32 %s885, %s27
          %s890 = smul.addr %s889, 64
          %s891 = scalar_lea.hbm %s8, %s890
          %s893 = sshll.u32 %s881, 4
          %s894 = int_to_ptr.vmem [resolvable:$true] %s893
          %896 = dma.vmem_to_hbm [thread:$0]  %s894, 64, %s891, %s878
        $region60: #{tpu_custom_call.1} parent=51 // pred_fallthru
          _
      $region52: #{tpu_custom_call.1} parent=5 // pred_fallthru
        _
      %p897 = scmp.le.s32.totalorder 2, %s17
      // Predicated region
      $region61: #{tpu_custom_call.1} parent=5 // pred_check
        %p898 = pneg %p897
      $region62: #{tpu_custom_call.1} parent=5 // pred_check_branch
        %900 = sbr.rel (%p898) target = $region64
      $region63: #{tpu_custom_call.1} parent=5 // pred_region
        %s901 = ssub.s32 %s17, 2
        // Predicated region
        $region65: #{tpu_custom_call.1} parent=63 // pred_check
          %p902 = pneg %p251
        $region66: #{tpu_custom_call.1} parent=63 // pred_check_branch
          %904 = sbr.rel (%p902) target = $region68
        $region67: #{tpu_custom_call.1} parent=63 // pred_region
          %s905 = sand.u32 %s236, 1
          %s906 = scalar_lea.sflag [#allocation5], %s905
          %s907 = sand.u32 %s236, 1
          %s908 = smul.addr %s907, 4
          %s909 = scalar_lea.vmem [#allocation4], %s908
          %910 = dma.done %s906, 64
        $region68: #{tpu_custom_call.1} parent=63 // pred_fallthru
          _
      $region64: #{tpu_custom_call.1} parent=5 // pred_fallthru
        _
    $region6: #{tpu_custom_call.1} parent=1 // loop_footer
      %s21 = sadd.s32 1, %s17
    $region7: #{tpu_custom_call.1} parent=1 // loop_footer_branch
      %16 = sbr.rel target = $region3
    $region8: #{tpu_custom_call.1} parent=1 // loop_exit
      _
    %911 = vsyncpa [#allocation5], 1
    %s912 = scalar_lea.sflag [#allocation5], 1
    %913 = vsyncpa %s912, 1

// kernel: tpu_custom_call.1
$region0: #{tpu_custom_call.1}
  #allocation0 [shape = 'u32[]', space=smem, size = 0x4, offset = 0x4, fixed_abs, tag = 'smem constant byte address 0x4 - core index']
  #allocation1 [shape = 'u32[144,128]{1,0:T(1,128)}', space=vmem, size = 0x12000, scoped, tag = 'internal scratch']
  #allocation2 [shape = 'bf16[8,32]{1,0:T(8,128)(2,1)}', space=vmem, size = 0x800, scoped, tag = 'scratch operand']
  #allocation3 [shape = 'bf16[32,8]{1,0:T(8,128)(2,1)}', space=vmem, size = 0x2000, scoped, tag = 'scratch operand']
  %s0 = inlined_call_operand.vmem [shape: f32[2,4,128], index: 0, kind: input, shape index: {}]
  %s1 = inlined_call_operand.vmem [shape: f32[2,8,8], index: 1, kind: input, shape index: {}]
  %s2 = inlined_call_operand.vmem [shape: bf16[32,4], index: 2, kind: input, shape index: {}]
  %s3 = inlined_call_operand.vmem [shape: f32[32,1], index: 3, kind: input, shape index: {}]
  %s4 = inlined_call_operand.vmem [shape: bf16[64,8], index: 4, kind: input, shape index: {}]
  %s5 = inlined_call_operand.vmem [shape: f32[64,1], index: 5, kind: input, shape index: {}]
  %s6 = inlined_call_operand.vmem [shape: bf16[4,32], index: 6, kind: input, shape index: {}]
  %s7 = inlined_call_operand.vmem [shape: f32[4,1], index: 7, kind: input, shape index: {}]
  %s8 = inlined_call_operand.hbm [shape: f32[2,4,128], index: 8, kind: output, shape index: {}]
  %s9 = sld [smem:[#allocation0]]
  $region69: #{tpu_custom_call.1} parent=0
    _
  %s11 = ssub.s32 1, %s9
  %s12 = scalar_select 0, %s11, %s9
  $region1: #{tpu_custom_call.1} parent=0
    #allocation4 [shape = 'u8[4096]{0}', space=vmem, size = 0x1000, scoped, tag = 'output window, operand 0']
    #allocation5 [shape = 's32[2]{0}', space=sflag, size = 0x8, scoped, tag = 'scoped memory for tpu_custom_call.1']
    %13 = vsyncpa [#allocation5], 0
    %s14 = scalar_lea.sflag [#allocation5], 1
    %15 = vsyncpa %s14, 0
    loop: start=0, step=1, limit=4
    $region2: #{tpu_custom_call.1} parent=1 // loop_pre_header
      _
    $region3: #{tpu_custom_call.1} parent=1 // loop_header
      %s17 = sphi 0, %s21
      %p18 = scmp.ge.s32.totalorder %s17, 4
      %s24 = sphi 0, %s43
      %s25 = sphi 0, %s39
      %s26 = sphi 0, %s35
      %s27 = sphi 0, %s24
      %s28 = sphi 0, %s25
      %s29 = sphi 0, %s26
      %s30 = sphi 0, %s27
      %s31 = sphi 0, %s28
      %s32 = sphi 0, %s29
      %s50 = sphi 0, %s52
      %s53 = sphi 0, %s50
      %s54 = sphi 0, %s53
      %s70 = sphi 0, %s54
      %s76 = sphi 0, %s78
      %s79 = sphi 0, %s76
      %s80 = sphi 0, %s79
      %s96 = sphi 0, %s80
      %s100 = sphi 0, %s100
      %s102 = sphi 0, %s100
      %s103 = sphi 0, %s102
      %s117 = sphi 0, %s103
      %s121 = sphi 0, %s121
      %s123 = sphi 0, %s121
      %s124 = sphi 0, %s123
      %s138 = sphi 0, %s124
      %s142 = sphi 0, %s142
      %s144 = sphi 0, %s142
      %s145 = sphi 0, %s144
      %s159 = sphi 0, %s145
      %s163 = sphi 0, %s163
      %s165 = sphi 0, %s163
      %s166 = sphi 0, %s165
      %s180 = sphi 0, %s166
      %s184 = sphi 0, %s184
      %s186 = sphi 0, %s184
      %s187 = sphi 0, %s186
      %s201 = sphi 0, %s187
      %s205 = sphi 0, %s205
      %s207 = sphi 0, %s205
      %s208 = sphi 0, %s207
      %s222 = sphi 0, %s208
      %s232 = sphi 0, %s234
      %s235 = sphi 0, %s232
      %s236 = sphi 0, %s235
      %s252 = sphi 0, %s236
    $region4: #{tpu_custom_call.1} parent=1 // loop_header_branch
      %20 = sbr.rel (%p18) target = $region8
    $region5: #{tpu_custom_call.1} parent=1 // loop_body
      %s22 = ssub.s32 %s17, 1
      %s23 = ssub.s32 %s17, 2
      %s33 = sadd.s32 1, %s26
      %p34 = scmp.ge.s32.totalorder %s33, 1
      %s35 = scalar_select %p34, 0, %s33
      %s36 = sadd.s32 1, %s25
      %s37 = scalar_select %p34, %s36, %s25
      %p38 = scmp.ge.s32.totalorder %s37, 1
      %s39 = scalar_select %p38, 0, %s37
      %s40 = sadd.s32 1, %s24
      %s41 = scalar_select %p38, %s40, %s24
      %p42 = scmp.ge.s32.totalorder %s41, 2
      %s43 = scalar_select %p42, 0, %s41
      %s44 = sadd.s32 %s25, %s26
      %s45 = sadd.s32 %s39, %s35
      %s46 = ssub.s32 %s24, %s43
      %s47 = ssub.s32 %s44, %s45
      %s48 = sor.u32 %s46, %s47
      %p49 = scmp.eq.s32.totalorder %s48, 0
      %s51 = sadd.s32 %s50, 1
      %s52 = scalar_select %p49, %s50, %s51
      %p55 = pneg %p49
      %p56 = scmp.eq.s32.totalorder %s17, 1
      %p57 = por %p55, %p56
      %p58 = scmp.ne.s32.totalorder %s50, %s53
      %p59 = scmp.eq.s32.totalorder %s17, 0
      %p60 = por %p58, %p59
      %p61 = scmp.ne.s32.totalorder %s50, %s53
      %p62 = scmp.eq.s32.totalorder %s22, 1
      %p63 = por %p61, %p62
      %p64 = scmp.ne.s32.totalorder %s53, %s54
      %p65 = scmp.eq.s32.totalorder %s22, 0
      %p66 = por %p64, %p65
      %p67 = scmp.ne.s32.totalorder %s53, %s54
      %p68 = scmp.eq.s32.totalorder %s23, 1
      %p69 = por %p67, %p68
      %p71 = scmp.ne.s32.totalorder %s54, %s70
      %p72 = scmp.eq.s32.totalorder %s23, 0
      %p73 = por %p71, %p72
      %s74 = ssub.s32 %s24, %s43
      %p75 = scmp.eq.s32.totalorder %s74, 0
      %s77 = sadd.s32 %s76, 1
      %s78 = scalar_select %p75, %s76, %s77
      %p81 = pneg %p75
      %p82 = scmp.eq.s32.totalorder %s17, 1
      %p83 = por %p81, %p82
      %p84 = scmp.ne.s32.totalorder %s76, %s79
      %p85 = scmp.eq.s32.totalorder %s17, 0
      %p86 = por %p84, %p85
      %p87 = scmp.ne.s32.totalorder %s76, %s79
      %p88 = scmp.eq.s32.totalorder %s22, 1
      %p89 = por %p87, %p88
      %p90 = scmp.ne.s32.totalorder %s79, %s80
      %p91 = scmp.eq.s32.totalorder %s22, 0
      %p92 = por %p90, %p91
      %p93 = scmp.ne.s32.totalorder %s79, %s80
      %p94 = scmp.eq.s32.totalorder %s23, 1
      %p95 = por %p93, %p94
      %p97 = scmp.ne.s32.totalorder %s80, %s96
      %p98 = scmp.eq.s32.totalorder %s23, 0
      %p99 = por %p97, %p98
      %s101 = sadd.s32 %s100, 1
      %p104 = scmp.eq.s32.totalorder %s17, 1
      %p105 = scmp.ne.s32.totalorder %s100, %s102
      %p106 = scmp.eq.s32.totalorder %s17, 0
      %p107 = por %p105, %p106
      %p108 = scmp.ne.s32.totalorder %s100, %s102
      %p109 = scmp.eq.s32.totalorder %s22, 1
      %p110 = por %p108, %p109
      %p111 = scmp.ne.s32.totalorder %s102, %s103
      %p112 = scmp.eq.s32.totalorder %s22, 0
      %p113 = por %p111, %p112
      %p114 = scmp.ne.s32.totalorder %s102, %s103
      %p115 = scmp.eq.s32.totalorder %s23, 1
      %p116 = por %p114, %p115
      %p118 = scmp.ne.s32.totalorder %s103, %s117
      %p119 = scmp.eq.s32.totalorder %s23, 0
      %p120 = por %p118, %p119
      %s122 = sadd.s32 %s121, 1
      %p125 = scmp.eq.s32.totalorder %s17, 1
      %p126 = scmp.ne.s32.totalorder %s121, %s123
      %p127 = scmp.eq.s32.totalorder %s17, 0
      %p128 = por %p126, %p127
      %p129 = scmp.ne.s32.totalorder %s121, %s123
      %p130 = scmp.eq.s32.totalorder %s22, 1
      %p131 = por %p129, %p130
      %p132 = scmp.ne.s32.totalorder %s123, %s124
      %p133 = scmp.eq.s32.totalorder %s22, 0
      %p134 = por %p132, %p133
      %p135 = scmp.ne.s32.totalorder %s123, %s124
      %p136 = scmp.eq.s32.totalorder %s23, 1
      %p137 = por %p135, %p136
      %p139 = scmp.ne.s32.totalorder %s124, %s138
      %p140 = scmp.eq.s32.totalorder %s23, 0
      %p141 = por %p139, %p140
      %s143 = sadd.s32 %s142, 1
      %p146 = scmp.eq.s32.totalorder %s17, 1
      %p147 = scmp.ne.s32.totalorder %s142, %s144
      %p148 = scmp.eq.s32.totalorder %s17, 0
      %p149 = por %p147, %p148
      %p150 = scmp.ne.s32.totalorder %s142, %s144
      %p151 = scmp.eq.s32.totalorder %s22, 1
      %p152 = por %p150, %p151
      %p153 = scmp.ne.s32.totalorder %s144, %s145
      %p154 = scmp.eq.s32.totalorder %s22, 0
      %p155 = por %p153, %p154
      %p156 = scmp.ne.s32.totalorder %s144, %s145
      %p157 = scmp.eq.s32.totalorder %s23, 1
      %p158 = por %p156, %p157
      %p160 = scmp.ne.s32.totalorder %s145, %s159
      %p161 = scmp.eq.s32.totalorder %s23, 0
      %p162 = por %p160, %p161
      %s164 = sadd.s32 %s163, 1
      %p167 = scmp.eq.s32.totalorder %s17, 1
      %p168 = scmp.ne.s32.totalorder %s163, %s165
      %p169 = scmp.eq.s32.totalorder %s17, 0
      %p170 = por %p168, %p169
      %p171 = scmp.ne.s32.totalorder %s163, %s165
      %p172 = scmp.eq.s32.totalorder %s22, 1
      %p173 = por %p171, %p172
      %p174 = scmp.ne.s32.totalorder %s165, %s166
      %p175 = scmp.eq.s32.totalorder %s22, 0
      %p176 = por %p174, %p175
      %p177 = scmp.ne.s32.totalorder %s165, %s166
      %p178 = scmp.eq.s32.totalorder %s23, 1
      %p179 = por %p177, %p178
      %p181 = scmp.ne.s32.totalorder %s166, %s180
      %p182 = scmp.eq.s32.totalorder %s23, 0
      %p183 = por %p181, %p182
      %s185 = sadd.s32 %s184, 1
      %p188 = scmp.eq.s32.totalorder %s17, 1
      %p189 = scmp.ne.s32.totalorder %s184, %s186
      %p190 = scmp.eq.s32.totalorder %s17, 0
      %p191 = por %p189, %p190
      %p192 = scmp.ne.s32.totalorder %s184, %s186
      %p193 = scmp.eq.s32.totalorder %s22, 1
      %p194 = por %p192, %p193
      %p195 = scmp.ne.s32.totalorder %s186, %s187
      %p196 = scmp.eq.s32.totalorder %s22, 0
      %p197 = por %p195, %p196
      %p198 = scmp.ne.s32.totalorder %s186, %s187
      %p199 = scmp.eq.s32.totalorder %s23, 1
      %p200 = por %p198, %p199
      %p202 = scmp.ne.s32.totalorder %s187, %s201
      %p203 = scmp.eq.s32.totalorder %s23, 0
      %p204 = por %p202, %p203
      %s206 = sadd.s32 %s205, 1
      %p209 = scmp.eq.s32.totalorder %s17, 1
      %p210 = scmp.ne.s32.totalorder %s205, %s207
      %p211 = scmp.eq.s32.totalorder %s17, 0
      %p212 = por %p210, %p211
      %p213 = scmp.ne.s32.totalorder %s205, %s207
      %p214 = scmp.eq.s32.totalorder %s22, 1
      %p215 = por %p213, %p214
      %p216 = scmp.ne.s32.totalorder %s207, %s208
      %p217 = scmp.eq.s32.totalorder %s22, 0
      %p218 = por %p216, %p217
      %p219 = scmp.ne.s32.totalorder %s207, %s208
      %p220 = scmp.eq.s32.totalorder %s23, 1
      %p221 = por %p219, %p220
      %p223 = scmp.ne.s32.totalorder %s208, %s222
      %p224 = scmp.eq.s32.totalorder %s23, 0
      %p225 = por %p223, %p224
      %s226 = sadd.s32 %s25, %s26
      %s227 = sadd.s32 %s39, %s35
      %s228 = ssub.s32 %s24, %s43
      %s229 = ssub.s32 %s226, %s227
      %s230 = sor.u32 %s228, %s229
      %p231 = scmp.eq.s32.totalorder %s230, 0
      %s233 = sadd.s32 %s232, 1
      %s234 = scalar_select %p231, %s232, %s233
      %p237 = pneg %p231
      %p238 = scmp.eq.s32.totalorder %s17, 1
      %p239 = por %p237, %p238
      %p240 = scmp.ne.s32.totalorder %s232, %s235
      %p241 = scmp.eq.s32.totalorder %s17, 0
      %p242 = por %p240, %p241
      %p243 = scmp.ne.s32.totalorder %s232, %s235
      %p244 = scmp.eq.s32.totalorder %s22, 1
      %p245 = por %p243, %p244
      %p246 = scmp.ne.s32.totalorder %s235, %s236
      %p247 = scmp.eq.s32.totalorder %s22, 0
      %p248 = por %p246, %p247
      %p249 = scmp.ne.s32.totalorder %s235, %s236
      %p250 = scmp.eq.s32.totalorder %s23, 1
      %p251 = por %p249, %p250
      %p253 = scmp.ne.s32.totalorder %s236, %s252
      %p254 = scmp.eq.s32.totalorder %s23, 0
      %p255 = por %p253, %p254
      %p256 = scmp.le.s32.totalorder 1, %s17
      %p257 = scmp.lt.s32.totalorder %s17, 3
      %p258 = pnand %p256, %p257
      %p259 = pneg %p258
      // Predicated region
      $region9: #{tpu_custom_call.1} parent=5 // pred_check
        _
      $region10: #{tpu_custom_call.1} parent=5 // pred_check_branch
        %261 = sbr.rel (%p258) target = $region12
      $region11: #{tpu_custom_call.1} parent=5 // pred_region
        %s262 = ssub.s32 %s17, 1
        // Predicated region
        $region13: #{tpu_custom_call.1} parent=11 // pred_check
          %p263 = pneg %p113
        $region14: #{tpu_custom_call.1} parent=11 // pred_check_branch
          %265 = sbr.rel (%p263) target = $region16
        $region15: #{tpu_custom_call.1} parent=11 // pred_region
          _
        $region16: #{tpu_custom_call.1} parent=11 // pred_fallthru
          _
        // Predicated region
        $region17: #{tpu_custom_call.1} parent=11 // pred_check
          %p266 = pneg %p134
        $region18: #{tpu_custom_call.1} parent=11 // pred_check_branch
          %268 = sbr.rel (%p266) target = $region20
        $region19: #{tpu_custom_call.1} parent=11 // pred_region
          _
        $region20: #{tpu_custom_call.1} parent=11 // pred_fallthru
          _
        // Predicated region
        $region21: #{tpu_custom_call.1} parent=11 // pred_check
          %p269 = pneg %p155
        $region22: #{tpu_custom_call.1} parent=11 // pred_check_branch
          %271 = sbr.rel (%p269) target = $region24
        $region23: #{tpu_custom_call.1} parent=11 // pred_region
          _
        $region24: #{tpu_custom_call.1} parent=11 // pred_fallthru
          _
        // Predicated region
        $region25: #{tpu_custom_call.1} parent=11 // pred_check
          %p272 = pneg %p176
        $region26: #{tpu_custom_call.1} parent=11 // pred_check_branch
          %274 = sbr.rel (%p272) target = $region28
        $region27: #{tpu_custom_call.1} parent=11 // pred_region
          _
        $region28: #{tpu_custom_call.1} parent=11 // pred_fallthru
          _
        // Predicated region
        $region29: #{tpu_custom_call.1} parent=11 // pred_check
          %p275 = pneg %p197
        $region30: #{tpu_custom_call.1} parent=11 // pred_check_branch
          %277 = sbr.rel (%p275) target = $region32
        $region31: #{tpu_custom_call.1} parent=11 // pred_region
          _
        $region32: #{tpu_custom_call.1} parent=11 // pred_fallthru
          _
        // Predicated region
        $region33: #{tpu_custom_call.1} parent=11 // pred_check
          %p278 = pneg %p218
        $region34: #{tpu_custom_call.1} parent=11 // pred_check_branch
          %280 = sbr.rel (%p278) target = $region36
        $region35: #{tpu_custom_call.1} parent=11 // pred_region
          _
        $region36: #{tpu_custom_call.1} parent=11 // pred_fallthru
          _
      $region12: #{tpu_custom_call.1} parent=5 // pred_fallthru
        _
      %p281 = scmp.lt.s32.totalorder %s17, 2
      // Predicated region
      $region37: #{tpu_custom_call.1} parent=5 // pred_check
        %p282 = pneg %p281
      $region38: #{tpu_custom_call.1} parent=5 // pred_check_branch
        %284 = sbr.rel (%p282) target = $region40
      $region39: #{tpu_custom_call.1} parent=5 // pred_region
        // Predicated region
        $region41: #{tpu_custom_call.1} parent=39 // pred_check
          %p285 = pneg %p60
        $region42: #{tpu_custom_call.1} parent=39 // pred_check_branch
          %287 = sbr.rel (%p285) target = $region44
        $region43: #{tpu_custom_call.1} parent=39 // pred_region
          %s288 = sadd.s32 %s25, %s26
          %p289 = scmp.lt.s32.totalorder %s24, 1
          %s290 = scalar_select %p289, %s24, 1
          %p291 = scmp.lt.s32.totalorder %s288, 0
          %s292 = scalar_select %p291, %s288, 0
          %s293 = sadd.s32 %s292, %s290
          %s294 = smul.addr %s293, 4
          %s295 = scalar_lea.vmem %s0, %s294
          %s296 = sadd.s32 %s25, %s26
        $region44: #{tpu_custom_call.1} parent=39 // pred_fallthru
          _
        // Predicated region
        $region45: #{tpu_custom_call.1} parent=39 // pred_check
          %p297 = pneg %p86
        $region46: #{tpu_custom_call.1} parent=39 // pred_check_branch
          %299 = sbr.rel (%p297) target = $region48
        $region47: #{tpu_custom_call.1} parent=39 // pred_region
          %p300 = scmp.lt.s32.totalorder %s24, 1
          %s301 = scalar_select %p300, %s24, 1
          %s302 = smul.addr %s301, 8
          %s303 = scalar_lea.vmem %s1, %s302
        $region48: #{tpu_custom_call.1} parent=39 // pred_fallthru
          _
      $region40: #{tpu_custom_call.1} parent=5 // pred_fallthru
        _
      %p304 = scmp.le.s32.totalorder 1, %s17
      %p305 = scmp.lt.s32.totalorder %s17, 3
      %p306 = pnand %p304, %p305
      %p307 = pneg %p306
      // Predicated region
      $region49: #{tpu_custom_call.1} parent=5 // pred_check
        _
      $region50: #{tpu_custom_call.1} parent=5 // pred_check_branch
        %309 = sbr.rel (%p306) target = $region52
      $region51: #{tpu_custom_call.1} parent=5 // pred_region
        %s310 = ssub.s32 %s17, 1
        %s311 = sadd.s32 %s28, %s29
        %p312 = scmp.lt.s32.totalorder %s27, 1
        %s313 = scalar_select %p312, %s27, 1
        %p314 = scmp.lt.s32.totalorder %s311, 0
        %s315 = scalar_select %p314, %s311, 0
        %s316 = sadd.s32 %s315, %s313
        %s317 = smul.addr %s316, 4
        %s318 = scalar_lea.vmem %s0, %s317
        %p319 = pneg %p66
        %p320 = pneg %p63
        %p321 = scmp.lt.s32.totalorder %s27, 1
        %s322 = scalar_select %p321, %s27, 1
        %s323 = smul.addr %s322, 8
        %s324 = scalar_lea.vmem %s1, %s323
        %p325 = pneg %p92
        %p326 = pneg %p89
        %p327 = pneg %p113
        %p328 = pneg %p110
        %p329 = pneg %p134
        %p330 = pneg %p131
        %p331 = pneg %p155
        %p332 = pneg %p152
        %p333 = pneg %p176
        %p334 = pneg %p173
        %p335 = pneg %p197
        %p336 = pneg %p194
        %p337 = pneg %p218
        %p338 = pneg %p215
        %p339 = pneg %p248
        %p340 = pneg %p245
        %s341 = sand.u32 %s235, 1
        %s342 = scalar_lea.sflag [#allocation5], %s341
        %s343 = sand.u32 %s235, 1
        %s344 = smul.addr %s343, 4
        %s345 = scalar_lea.vmem [#allocation4], %s344
        %s346 = sadd.s32 %s28, %s29
        %p347 = scmp.lt.s32.totalorder %s27, 1
        %s348 = scalar_select %p347, %s27, 1
        %p349 = scmp.lt.s32.totalorder %s346, 0
        %s350 = scalar_select %p349, %s346, 0
        %s351 = sadd.s32 %s350, %s348
        %s352 = smul.addr %s351, 4
        %s353 = scalar_lea.vmem %s0, %s352
        %s354 = sadd.s32 %s28, %s29
        %p355 = scmp.lt.s32.totalorder %s27, 1
        %s356 = scalar_select %p355, %s27, 1
        %s357 = smul.addr %s356, 8
        %s358 = scalar_lea.vmem %s1, %s357
        %s359 = sadd.s32 %s28, %s29
        %p361 = scmp.eq.s32.totalorder %s29, 0
        // Predicated region
        $region53: #{tpu_custom_call.1} parent=51 // pred_check
          %p362 = pneg %p361
        $region54: #{tpu_custom_call.1} parent=51 // pred_check_branch
          %364 = sbr.rel (%p362) target = $region56
        $region55: #{tpu_custom_call.1} parent=51 // pred_region
          %v365 = vld [vmem:[%s358] sm:$0xff]
          %v366 = vpack.c.bf16 %v365, %v365
          %v367 = vld [vmem:[%s4] sm:$0xf]
          %v368 = vld [vmem:[%s4 + $0x4] sm:$0xf]
          %v369 = vld [vmem:[%s4 + $0x8] sm:$0xf]
          %v370 = vld [vmem:[%s4 + $0xc] sm:$0xf]
          %v371 = vld [vmem:[%s4 + $0x10] sm:$0xf]
          %v372 = vld [vmem:[%s4 + $0x14] sm:$0xf]
          %v373 = vld [vmem:[%s4 + $0x18] sm:$0xf]
          %v374 = vld [vmem:[%s4 + $0x1c] sm:$0xf]
          %v375 = vld [vmem:[%s5] sm:$0xff]
          %v376 = vld [vmem:[%s5 + $0x8] sm:$0xff]
          %v377 = vld [vmem:[%s5 + $0x10] sm:$0xff]
          %v378 = vld [vmem:[%s5 + $0x18] sm:$0xff]
          %v379 = vld [vmem:[%s5 + $0x20] sm:$0xff]
          %v380 = vld [vmem:[%s5 + $0x28] sm:$0xff]
          %v381 = vld [vmem:[%s5 + $0x30] sm:$0xff]
          %v382 = vld [vmem:[%s5 + $0x38] sm:$0xff]
          %384 = vset.pattern.permute.xlu0 0
          %385 = vperm.xlu0 %384, %v375
          %v386 = vpop.permute.xlu0 %385
          %389 = vset.pattern.permute.xlu0 0
          %390 = vperm.xlu0 %389, %v376
          %v391 = vpop.permute.xlu0 %390
          %394 = vset.pattern.permute.xlu0 0
          %395 = vperm.xlu0 %394, %v377
          %v396 = vpop.permute.xlu0 %395
          %399 = vset.pattern.permute.xlu0 0
          %400 = vperm.xlu0 %399, %v378
          %v401 = vpop.permute.xlu0 %400
          %404 = vset.pattern.permute.xlu0 0
          %405 = vperm.xlu0 %404, %v379
          %v406 = vpop.permute.xlu0 %405
          %409 = vset.pattern.permute.xlu0 0
          %410 = vperm.xlu0 %409, %v380
          %v411 = vpop.permute.xlu0 %410
          %414 = vset.pattern.permute.xlu0 0
          %415 = vperm.xlu0 %414, %v381
          %v416 = vpop.permute.xlu0 %415
          %419 = vset.pattern.permute.xlu0 0
          %420 = vperm.xlu0 %419, %v382
          %v421 = vpop.permute.xlu0 %420
          %v431 = vunpack.c.l.b16 %v367
          %v432 = vunpack.c.l.b16 %v368
          %v433 = vunpack.c.l.b16 %v369
          %v434 = vunpack.c.l.b16 %v370
          %v435 = vunpack.c.l.b16 %v371
          %v436 = vunpack.c.l.b16 %v372
          %v437 = vunpack.c.l.b16 %v373
          %v438 = vunpack.c.l.b16 %v374
          %v439 = vpack.c.b16 %v432, %v431
          %v440 = vpack.c.b16 %v434, %v433
          %v441 = vpack.c.b16 %v436, %v435
          %v442 = vpack.c.b16 %v438, %v437
          %vm443 = vcmask 64512
          %v445 = vsel %vm443, %v439, 0
          %v448 = vsel %vm443, %v440, 0
          %v451 = vsel %vm443, %v441, 0
          %v454 = vsel %vm443, %v442, 0
          %vm456 = vcmask 1043456
          %v458 = vsel %vm456, %v366, 0
          %460 = vmatprep.subr.bf16.mxu0 0
          %461 = vmatpush1.bf16.msra.mxu0 0
          %462 = vmatprep.subr.bf16.mxu0 0
          %463 = vmatpush1.bf16.msra.mxu0 0
          %464 = vmatprep.subr.bf16.mxu0 0
          %465 = vmatpush1.bf16.msra.mxu0 0
          %466 = vmatprep.subr.bf16.mxu0 0
          %467 = vmatpush1.bf16.msra.mxu0 0
          %468 = vmatprep.subr.bf16.mxu0 0
          %469 = vmatpush1.bf16.msra.mxu0 0
          %470 = vmatprep.subr.bf16.mxu0 0
          %471 = vmatpush1.bf16.msra.mxu0 0
          %472 = vmatprep.subr.bf16.mxu0 0
          %473 = vmatpush1.bf16.msra.mxu0 0
          %474 = vmatprep.subr.bf16.mxu0 0
          %475 = vmatpush1.bf16.msra.mxu0 %v458
          %476 = vmatprep.subr.bf16.mxu0 0
          %477 = vmatpush2.bf16.msra.mxu0 0
          %478 = vmatprep.subr.bf16.mxu0 0
          %479 = vmatpush2.bf16.msra.mxu0 0
          %480 = vmatprep.subr.bf16.mxu0 0
          %481 = vmatpush2.bf16.msra.mxu0 0
          %482 = vmatprep.subr.bf16.mxu0 0
          %483 = vmatpush2.bf16.msra.mxu0 0
          %484 = vmatprep.subr.bf16.mxu0 0
          %485 = vmatpush2.bf16.msra.mxu0 0
          %486 = vmatprep.subr.bf16.mxu0 0
          %487 = vmatpush2.bf16.msra.mxu0 0
          %488 = vmatprep.subr.bf16.mxu0 0
          %489 = vmatpush2.bf16.msra.mxu0 0
          %490 = vmatprep.subr.bf16.mxu0 0
          %491 = vmatpush2.bf16.msra.mxu0 0
          %492 = vmatprep.mubr.bf16.mxu0 0
          %493 = vmatmul.mubr.bf16.gmra.mxu0 %v445
          %v494 = vpop.f32.mrf.mxu0
          %v495 = vadd.f32 %v386, %v494
          %v496 = vpop.f32.mrf.mxu0
          %v497 = vpop.f32.mrf.mxu0
          %v498 = vadd.f32 %v391, %v497
          %v499 = vpop.f32.mrf.mxu0
          %500 = vmatprep.mubr.bf16.mxu0 0
          %501 = vmatmul.mubr.bf16.gmra.mxu0 %v448
          %v502 = vpop.f32.mrf.mxu0
          %v503 = vadd.f32 %v396, %v502
          %v504 = vpop.f32.mrf.mxu0
          %v505 = vpop.f32.mrf.mxu0
          %v506 = vadd.f32 %v401, %v505
          %v507 = vpop.f32.mrf.mxu0
          %508 = vmatprep.mubr.bf16.mxu0 0
          %509 = vmatmul.mubr.bf16.gmra.mxu0 %v451
          %v510 = vpop.f32.mrf.mxu0
          %v511 = vadd.f32 %v406, %v510
          %v512 = vpop.f32.mrf.mxu0
          %v513 = vpop.f32.mrf.mxu0
          %v514 = vadd.f32 %v411, %v513
          %v515 = vpop.f32.mrf.mxu0
          %516 = vmatprep.mubr.bf16.mxu0 0
          %517 = vmatmul.mubr.bf16.gmra.mxu0 %v454
          %v518 = vpop.f32.mrf.mxu0
          %v519 = vadd.f32 %v416, %v518
          %v520 = vpop.f32.mrf.mxu0
          %v521 = vpop.f32.mrf.mxu0
          %v522 = vadd.f32 %v421, %v521
          %v523 = vpop.f32.mrf.mxu0
          %524 = vdwg.mxu0
          %525 = vxpose.xlu0.b32.start [1/16] %v495, 128
          %526 = vxpose.xlu0.b32.cont [2/16] %v498, 128
          %527 = vxpose.xlu0.b32.cont [3/16] %v503, 128
          %528 = vxpose.xlu0.b32.cont [4/16] %v506, 128
          %529 = vxpose.xlu0.b32.cont [5/16] 0.0, 128
          %530 = vxpose.xlu0.b32.cont [6/16] 0.0, 128
          %531 = vxpose.xlu0.b32.cont [7/16] 0.0, 128
          %532 = vxpose.xlu0.b32.cont [8/16] 0.0, 128
          %533 = vxpose.xlu0.b32.cont [9/16] 0.0, 128
          %534 = vxpose.xlu0.b32.cont [10/16] 0.0, 128
          %535 = vxpose.xlu0.b32.cont [11/16] 0.0, 128
          %536 = vxpose.xlu0.b32.cont [12/16] 0.0, 128
          %537 = vxpose.xlu0.b32.cont [13/16] 0.0, 128
          %538 = vxpose.xlu0.b32.cont [14/16] 0.0, 128
          %539 = vxpose.xlu0.b32.cont [15/16] 0.0, 128
          %540 = vxpose.xlu0.b32.end [16/16] 0.0, 128
          %v541 = vpop.trf.xlu0
          %v542 = vpop.trf.xlu0
          %v543 = vpop.trf.xlu0
          %v544 = vpop.trf.xlu0
          %v545 = vpop.trf.xlu0
          %v546 = vpop.trf.xlu0
          %v547 = vpop.trf.xlu0
          %v548 = vpop.trf.xlu0
          %v549 = vpop.trf.xlu0
          %v550 = vpop.trf.xlu0
          %v551 = vpop.trf.xlu0
          %v552 = vpop.trf.xlu0
          %v553 = vpop.trf.xlu0
          %v554 = vpop.trf.xlu0
          %v555 = vpop.trf.xlu0
          %v556 = vpop.trf.xlu0
          %v557 = vpack.c.bf16 %v541, %v541
          %vm558 = vcmask 257024
          %559 = vst.msk [vmem:[#allocation2] sm:$0xf] %vm558, %v557
          %v560 = vpack.c.bf16 %v514, %v511
          %v561 = vpack.c.bf16 %v522, %v519
          %v564 = vunpack.c.l.b16 %v560
          %v565 = vunpack.c.h.b16 %v560
          %v566 = vunpack.c.l.b16 %v561
          %v567 = vunpack.c.h.b16 %v561
          %v568 = vpack.c.b16 %v564, %v564
          %v569 = vpack.c.b16 %v565, %v565
          %v570 = vpack.c.b16 %v566, %v566
          %v571 = vpack.c.b16 %v567, %v567
          %vm576 = vcmask 60416
          %577 = vst.msk [vmem:[#allocation3] sm:$0xf] %vm576, %v568
          %578 = vst.msk [vmem:[#allocation3 + $0x4] sm:$0xf] %vm576, %v569
          %579 = vst.msk [vmem:[#allocation3 + $0x8] sm:$0xf] %vm576, %v570
          %580 = vst.msk [vmem:[#allocation3 + $0xc] sm:$0xf] %vm576, %v571
        $region56: #{tpu_custom_call.1} parent=51 // pred_fallthru
          _
        %v581 = vld [vmem:[%s353] sm:$0xf]
        %v582 = vpack.c.bf16 %v581, %v581
        %v583 = vld [vmem:[%s2] sm:$0xf]
        %v584 = vld [vmem:[%s2 + $0x4] sm:$0xf]
        %v585 = vld [vmem:[%s2 + $0x8] sm:$0xf]
        %v586 = vld [vmem:[%s2 + $0xc] sm:$0xf]
        %v587 = vld [vmem:[%s3] sm:$0xff]
        %v588 = vld [vmem:[%s3 + $0x8] sm:$0xff]
        %v589 = vld [vmem:[%s3 + $0x10] sm:$0xff]
        %v590 = vld [vmem:[%s3 + $0x18] sm:$0xff]
        %592 = vset.pattern.permute.xlu0 0
        %593 = vperm.xlu0 %592, %v587
        %v594 = vpop.permute.xlu0 %593
        %597 = vset.pattern.permute.xlu0 0
        %598 = vperm.xlu0 %597, %v588
        %v599 = vpop.permute.xlu0 %598
        %602 = vset.pattern.permute.xlu0 0
        %603 = vperm.xlu0 %602, %v589
        %v604 = vpop.permute.xlu0 %603
        %607 = vset.pattern.permute.xlu0 0
        %608 = vperm.xlu0 %607, %v590
        %v609 = vpop.permute.xlu0 %608
        %v615 = vunpack.c.l.b16 %v583
        %v616 = vunpack.c.l.b16 %v584
        %v617 = vunpack.c.l.b16 %v585
        %v618 = vunpack.c.l.b16 %v586
        %v619 = vpack.c.b16 %v616, %v615
        %v620 = vpack.c.b16 %v618, %v617
        %vm621 = vcmask 31744
        %v623 = vsel %vm621, %v619, 0
        %v626 = vsel %vm621, %v620, 0
        %vm628 = vcmask 1041408
        %v630 = vsel %vm628, %v582, 0
        %632 = vmatprep.subr.bf16.mxu0 0
        %633 = vmatpush1.bf16.msra.mxu0 0
        %634 = vmatprep.subr.bf16.mxu0 0
        %635 = vmatpush1.bf16.msra.mxu0 0
        %636 = vmatprep.subr.bf16.mxu0 0
        %637 = vmatpush1.bf16.msra.mxu0 0
        %638 = vmatprep.subr.bf16.mxu0 0
        %639 = vmatpush1.bf16.msra.mxu0 0
        %640 = vmatprep.subr.bf16.mxu0 0
        %641 = vmatpush1.bf16.msra.mxu0 0
        %642 = vmatprep.subr.bf16.mxu0 0
        %643 = vmatpush1.bf16.msra.mxu0 0
        %644 = vmatprep.subr.bf16.mxu0 0
        %645 = vmatpush1.bf16.msra.mxu0 0
        %646 = vmatprep.subr.bf16.mxu0 0
        %647 = vmatpush1.bf16.msra.mxu0 %v630
        %648 = vmatprep.subr.bf16.mxu0 0
        %649 = vmatpush2.bf16.msra.mxu0 0
        %650 = vmatprep.subr.bf16.mxu0 0
        %651 = vmatpush2.bf16.msra.mxu0 0
        %652 = vmatprep.subr.bf16.mxu0 0
        %653 = vmatpush2.bf16.msra.mxu0 0
        %654 = vmatprep.subr.bf16.mxu0 0
        %655 = vmatpush2.bf16.msra.mxu0 0
        %656 = vmatprep.subr.bf16.mxu0 0
        %657 = vmatpush2.bf16.msra.mxu0 0
        %658 = vmatprep.subr.bf16.mxu0 0
        %659 = vmatpush2.bf16.msra.mxu0 0
        %660 = vmatprep.subr.bf16.mxu0 0
        %661 = vmatpush2.bf16.msra.mxu0 0
        %662 = vmatprep.subr.bf16.mxu0 0
        %663 = vmatpush2.bf16.msra.mxu0 0
        %664 = vmatprep.mubr.bf16.mxu0 0
        %665 = vmatmul.mubr.bf16.gmra.mxu0 %v623
        %v666 = vpop.f32.mrf.mxu0
        %v667 = vadd.f32 %v594, %v666
        %v668 = vpop.f32.mrf.mxu0
        %v669 = vpop.f32.mrf.mxu0
        %v670 = vadd.f32 %v599, %v669
        %v671 = vpop.f32.mrf.mxu0
        %672 = vmatprep.mubr.bf16.mxu0 0
        %673 = vmatmul.mubr.bf16.gmra.mxu0 %v626
        %v674 = vpop.f32.mrf.mxu0
        %v675 = vadd.f32 %v604, %v674
        %v676 = vpop.f32.mrf.mxu0
        %v677 = vpop.f32.mrf.mxu0
        %v678 = vadd.f32 %v609, %v677
        %v679 = vpop.f32.mrf.mxu0
        %680 = vdwg.mxu0
        %v681 = vpack.c.bf16 %v670, %v667
        %v682 = vpack.c.bf16 %v678, %v675
        %v683 = vld [vmem:[#allocation2] sm:$0xf]
        %vm684 = vcmask 261120
        %v686 = vsel %vm684, %v683, 0
        %688 = vmatprep.subr.bf16.mxu0 0
        %689 = vmatpush1.bf16.msra.mxu0 0
        %690 = vmatprep.subr.bf16.mxu0 0
        %691 = vmatpush1.bf16.msra.mxu0 0
        %692 = vmatprep.subr.bf16.mxu0 0
        %693 = vmatpush1.bf16.msra.mxu0 0
        %694 = vmatprep.subr.bf16.mxu0 0
        %695 = vmatpush1.bf16.msra.mxu0 0
        %696 = vmatprep.subr.bf16.mxu0 0
        %697 = vmatpush1.bf16.msra.mxu0 0
        %698 = vmatprep.subr.bf16.mxu0 0
        %699 = vmatpush1.bf16.msra.mxu0 0
        %700 = vmatprep.subr.bf16.mxu0 0
        %701 = vmatpush1.bf16.msra.mxu0 %v682
        %702 = vmatprep.subr.bf16.mxu0 0
        %703 = vmatpush1.bf16.msra.mxu0 %v681
        %704 = vmatprep.subr.bf16.mxu0 0
        %705 = vmatpush2.bf16.msra.mxu0 0
        %706 = vmatprep.subr.bf16.mxu0 0
        %707 = vmatpush2.bf16.msra.mxu0 0
        %708 = vmatprep.subr.bf16.mxu0 0
        %709 = vmatpush2.bf16.msra.mxu0 0
        %710 = vmatprep.subr.bf16.mxu0 0
        %711 = vmatpush2.bf16.msra.mxu0 0
        %712 = vmatprep.subr.bf16.mxu0 0
        %713 = vmatpush2.bf16.msra.mxu0 0
        %714 = vmatprep.subr.bf16.mxu0 0
        %715 = vmatpush2.bf16.msra.mxu0 0
        %716 = vmatprep.subr.bf16.mxu0 0
        %717 = vmatpush2.bf16.msra.mxu0 0
        %718 = vmatprep.subr.bf16.mxu0 0
        %719 = vmatpush2.bf16.msra.mxu0 0
        %720 = vmatprep.mubr.bf16.mxu0 0
        %721 = vmatmul.mubr.bf16.gmra.mxu0 %v686
        %v722 = vpop.f32.mrf.mxu0
        %v723 = vadd.f32 0.0, %v722
        %v724 = vpop.f32.mrf.mxu0
        %v725 = vpop.f32.mrf.mxu0
        %v726 = vpop.f32.mrf.mxu0
        %727 = vdwg.mxu0
        %v728 = vrot.slane %v723, 4
        %v729 = vmax.f32 %v723, %v728
        %v730 = vrot.slane %v729, 2
        %v731 = vmax.f32 %v729, %v730
        %v732 = vrot.slane %v731, 1
        %v733 = vmax.f32 %v731, %v732
        %v734 = vsub.f32 %v723, %v733
        %v735 = vmul.f32 %v734, 1.442695
        %v736 = vpow.pop %v735
        %v737 = vrot.slane %v736, 4
        %v738 = vadd.f32 %v736, %v737
        %v739 = vrot.slane %v738, 2
        %v740 = vadd.f32 %v738, %v739
        %v741 = vrot.slane %v740, 1
        %v742 = vadd.f32 %v740, %v741
        %v743 = vld [vmem:[#allocation3] sm:$0xf]
        %v744 = vld [vmem:[#allocation3 + $0x4] sm:$0xf]
        %v745 = vld [vmem:[#allocation3 + $0x8] sm:$0xf]
        %v746 = vld [vmem:[#allocation3 + $0xc] sm:$0xf]
        %v747 = vpack.c.bf16 %v736, %v736
        %v752 = vunpack.c.l.b16 %v743
        %v753 = vunpack.c.l.b16 %v744
        %v754 = vunpack.c.l.b16 %v745
        %v755 = vunpack.c.l.b16 %v746
        %v756 = vpack.c.b16 %v753, %v752
        %v757 = vpack.c.b16 %v755, %v754
        %vm758 = vcmask 64512
        %v760 = vsel %vm758, %v756, 0
        %v763 = vsel %vm758, %v757, 0
        %vm765 = vcmask 1043456
        %v767 = vsel %vm765, %v747, 0
        %769 = vmatprep.subr.bf16.mxu0 0
        %770 = vmatpush1.bf16.msra.mxu0 0
        %771 = vmatprep.subr.bf16.mxu0 0
        %772 = vmatpush1.bf16.msra.mxu0 0
        %773 = vmatprep.subr.bf16.mxu0 0
        %774 = vmatpush1.bf16.msra.mxu0 0
        %775 = vmatprep.subr.bf16.mxu0 0
        %776 = vmatpush1.bf16.msra.mxu0 0
        %777 = vmatprep.subr.bf16.mxu0 0
        %778 = vmatpush1.bf16.msra.mxu0 0
        %779 = vmatprep.subr.bf16.mxu0 0
        %780 = vmatpush1.bf16.msra.mxu0 0
        %781 = vmatprep.subr.bf16.mxu0 0
        %782 = vmatpush1.bf16.msra.mxu0 0
        %783 = vmatprep.subr.bf16.mxu0 0
        %784 = vmatpush1.bf16.msra.mxu0 %v767
        %785 = vmatprep.subr.bf16.mxu0 0
        %786 = vmatpush2.bf16.msra.mxu0 0
        %787 = vmatprep.subr.bf16.mxu0 0
        %788 = vmatpush2.bf16.msra.mxu0 0
        %789 = vmatprep.subr.bf16.mxu0 0
        %790 = vmatpush2.bf16.msra.mxu0 0
        %791 = vmatprep.subr.bf16.mxu0 0
        %792 = vmatpush2.bf16.msra.mxu0 0
        %793 = vmatprep.subr.bf16.mxu0 0
        %794 = vmatpush2.bf16.msra.mxu0 0
        %795 = vmatprep.subr.bf16.mxu0 0
        %796 = vmatpush2.bf16.msra.mxu0 0
        %797 = vmatprep.subr.bf16.mxu0 0
        %798 = vmatpush2.bf16.msra.mxu0 0
        %799 = vmatprep.subr.bf16.mxu0 0
        %800 = vmatpush2.bf16.msra.mxu0 0
        %801 = vmatprep.mubr.bf16.mxu0 0
        %802 = vmatmul.mubr.bf16.gmra.mxu0 %v760
        %v803 = vpop.f32.mrf.mxu0
        %v804 = vadd.f32 0.0, %v803
        %v805 = vpop.f32.mrf.mxu0
        %v806 = vpop.f32.mrf.mxu0
        %v807 = vadd.f32 0.0, %v806
        %v808 = vpop.f32.mrf.mxu0
        %809 = vmatprep.mubr.bf16.mxu0 0
        %810 = vmatmul.mubr.bf16.gmra.mxu0 %v763
        %v811 = vpop.f32.mrf.mxu0
        %v812 = vadd.f32 0.0, %v811
        %v813 = vpop.f32.mrf.mxu0
        %v814 = vpop.f32.mrf.mxu0
        %v815 = vadd.f32 0.0, %v814
        %v816 = vpop.f32.mrf.mxu0
        %817 = vdwg.mxu0
        %v818 = vrcp.pop %v742
        %v819 = vmul.f32 %v804, %v818
        %v820 = vmul.f32 %v807, %v818
        %v821 = vmul.f32 %v812, %v818
        %v822 = vmul.f32 %v815, %v818
        %v823 = vld [vmem:[%s6] sm:$0x3]
        %v824 = vpack.c.bf16 %v820, %v819
        %v825 = vpack.c.bf16 %v822, %v821
        %v826 = vld [vmem:[%s7] sm:$0xf]
        %828 = vset.pattern.permute.xlu0 0
        %829 = vperm.xlu0 %828, %v826
        %v830 = vpop.permute.xlu0 %829
        %v833 = vsel %vm684, %v823, 0
        %835 = vmatprep.subr.bf16.mxu0 0
        %836 = vmatpush1.bf16.msra.mxu0 0
        %837 = vmatprep.subr.bf16.mxu0 0
        %838 = vmatpush1.bf16.msra.mxu0 0
        %839 = vmatprep.subr.bf16.mxu0 0
        %840 = vmatpush1.bf16.msra.mxu0 0
        %841 = vmatprep.subr.bf16.mxu0 0
        %842 = vmatpush1.bf16.msra.mxu0 0
        %843 = vmatprep.subr.bf16.mxu0 0
        %844 = vmatpush1.bf16.msra.mxu0 0
        %845 = vmatprep.subr.bf16.mxu0 0
        %846 = vmatpush1.bf16.msra.mxu0 0
        %847 = vmatprep.subr.bf16.mxu0 0
        %848 = vmatpush1.bf16.msra.mxu0 %v825
        %849 = vmatprep.subr.bf16.mxu0 0
        %850 = vmatpush1.bf16.msra.mxu0 %v824
        %851 = vmatprep.subr.bf16.mxu0 0
        %852 = vmatpush2.bf16.msra.mxu0 0
        %853 = vmatprep.subr.bf16.mxu0 0
        %854 = vmatpush2.bf16.msra.mxu0 0
        %855 = vmatprep.subr.bf16.mxu0 0
        %856 = vmatpush2.bf16.msra.mxu0 0
        %857 = vmatprep.subr.bf16.mxu0 0
        %858 = vmatpush2.bf16.msra.mxu0 0
        %859 = vmatprep.subr.bf16.mxu0 0
        %860 = vmatpush2.bf16.msra.mxu0 0
        %861 = vmatprep.subr.bf16.mxu0 0
        %862 = vmatpush2.bf16.msra.mxu0 0
        %863 = vmatprep.subr.bf16.mxu0 0
        %864 = vmatpush2.bf16.msra.mxu0 0
        %865 = vmatprep.subr.bf16.mxu0 0
        %866 = vmatpush2.bf16.msra.mxu0 0
        %867 = vmatprep.mubr.bf16.mxu0 0
        %868 = vmatmul.mubr.bf16.gmra.mxu0 %v833
        %v869 = vpop.f32.mrf.mxu0
        %v870 = vadd.f32 %v830, %v869
        %v871 = vpop.f32.mrf.mxu0
        %v872 = vpop.f32.mrf.mxu0
        %v873 = vpop.f32.mrf.mxu0
        %874 = vdwg.mxu0
        %v875 = vadd.f32 %v870, %v581
        %876 = vst [vmem:[%s345] sm:$0xf] %v875
        %s877 = sand.u32 %s235, 1
        %s878 = scalar_lea.sflag [#allocation5], %s877
        %s879 = sand.u32 %s235, 1
        %s880 = smul.addr %s879, 4
        %s881 = scalar_lea.vmem [#allocation4], %s880
        // Predicated region
        $region57: #{tpu_custom_call.1} parent=51 // pred_check
          %p882 = pneg %p245
        $region58: #{tpu_custom_call.1} parent=51 // pred_check_branch
          %884 = sbr.rel (%p882) target = $region60
        $region59: #{tpu_custom_call.1} parent=51 // pred_region
          %s885 = sadd.s32 %s28, %s29
          %s887 = ssub.s32 64, 64
          %888 = vsyncadd %s878, %s887
          %s889 = sadd.s32 %s885, %s27
          %s890 = smul.addr %s889, 64
          %s891 = scalar_lea.hbm %s8, %s890
          %s893 = sshll.u32 %s881, 4
          %s894 = int_to_ptr.vmem [resolvable:$true] %s893
          %896 = dma.vmem_to_hbm [thread:$0]  %s894, 64, %s891, %s878
        $region60: #{tpu_custom_call.1} parent=51 // pred_fallthru
          _
      $region52: #{tpu_custom_call.1} parent=5 // pred_fallthru
        _
      %p897 = scmp.le.s32.totalorder 2, %s17
      // Predicated region
      $region61: #{tpu_custom_call.1} parent=5 // pred_check
        %p898 = pneg %p897
      $region62: #{tpu_custom_call.1} parent=5 // pred_check_branch
        %900 = sbr.rel (%p898) target = $region64
      $region63: #{tpu_custom_call.1} parent=5 // pred_region
        %s901 = ssub.s32 %s17, 2
        // Predicated region
        $region65: #{tpu_custom_call.1} parent=63 // pred_check
          %p902 = pneg %p251
        $region66: #{tpu_custom_call.1} parent=63 // pred_check_branch
          %904 = sbr.rel (%p902) target = $region68
        $region67: #{tpu_custom_call.1} parent=63 // pred_region
          %s905 = sand.u32 %s236, 1
          %s906 = scalar_lea.sflag [#allocation5], %s905
          %s907 = sand.u32 %s236, 1
          %s908 = smul.addr %s907, 4
          %s909 = scalar_lea.vmem [#allocation4], %s908
          %910 = dma.done %s906, 64
        $region68: #{tpu_custom_call.1} parent=63 // pred_fallthru
          _
      $region64: #{tpu_custom_call.1} parent=5 // pred_fallthru
        _
    $region6: #{tpu_custom_call.1} parent=1 // loop_footer
      %s21 = sadd.s32 1, %s17
    $region7: #{tpu_custom_call.1} parent=1 // loop_footer_branch
      %16 = sbr.rel target = $region3
    $region8: #{tpu_custom_call.1} parent=1 // loop_exit
      _
    %911 = vsyncpa [#allocation5], 1
    %s912 = scalar_lea.sflag [#allocation5], 1
    %913 = vsyncpa %s912, 1

</llo_original>
